<compile_context>
chip_gen: v5e
topology: v5e:2x2
jax: 0.10.0
libtpu: 0.0.40
codegen_flags: <defaults>
</compile_context>

<pallas_src>
import functools

import jax
import jax.numpy as jnp
import numpy as np
from jax.experimental import pallas as pl
from jax.experimental.pallas import tpu as pltpu

EPS = 1e-5


def _residual_block_kernel(x_ref, w1_ref, w2_ref, mask_ref, o_ref, col_ref, *, W):
    # x_ref    : (1, C, HW)   one sample, NCHW flattened over space (lane-dense)
    # w*_ref   : (C, 9*C)     weight slab, column index = tap*C + c_in
    # mask_ref : (9, 1, HW)   0/1 boundary-validity mask per tap
    # o_ref    : (1, C, HW)
    # col_ref  : (9*C, HW)    VMEM im2col scratch (reused by both convs)
    _, C, HW = x_ref.shape

    def conv3x3(src, w_ref):
        # src: (C, HW) f32. Build im2col with 9 lane rotations + masks, then one
        # MXU matmul over the fused (tap, c_in) contraction dim.
        for t in range(9):
            oy, ox = t // 3 - 1, t % 3 - 1
            d = oy * W + ox                             # flat spatial tap offset
            shifted = src if d == 0 else pltpu.roll(src, shift=(-d) % HW, axis=1)
            if oy == 0 and ox == 0:
                tap = shifted                           # center tap: mask is all-ones
            else:
                tap = shifted * mask_ref[t]             # zero out-of-image taps
            col_ref[t * C:(t + 1) * C, :] = tap         # aligned, lane-dense store
        return jnp.dot(w_ref[...].astype(jnp.float32), col_ref[...],
                       preferred_element_type=jnp.float32)   # (C, HW)

    def instnorm_relu(z):
        # per-channel norm over the spatial axis (biased variance, eps=1e-5)
        mean = jnp.mean(z, axis=1, keepdims=True)
        d = z - mean
        var = jnp.mean(d * d, axis=1, keepdims=True)
        return jnp.maximum(d * jax.lax.rsqrt(var + EPS), 0.0)

    x2d = x_ref[0].astype(jnp.float32)                  # (C, HW)
    y = instnorm_relu(conv3x3(x2d, w1_ref))             # convnormrelu1
    y = instnorm_relu(conv3x3(y, w2_ref))               # convnormrelu2
    o_ref[0] = jnp.maximum(x2d + y, 0.0).astype(o_ref.dtype)   # residual + ReLU


@jax.jit
def residual_block(x, w1, b1, w2, b2):
    """x: (N, C, H, W) NCHW. w*: (3, 3, C, C) HWIO. b*: (C,).

    b1/b2 are accepted for interface parity with the PyTorch module but unused:
    with non-affine InstanceNorm the conv bias is exactly cancelled by the mean
    subtraction (bit-for-bit in exact arithmetic).
    """
    del b1, b2
    N, C, H, W = x.shape
    HW = H * W

    x_flat = x.reshape(N, C, HW)              # free reshape (contiguous NCHW)
    w1_mat = w1.reshape(9 * C, C).T           # (C_out, 9*C_in), col = tap*C + c_in
    w2_mat = w2.reshape(9 * C, C).T

    # Per-tap validity masks over flattened spatial positions (compile-time const).
    p = np.arange(HW)
    i, j = p // W, p % W
    masks = np.stack([
        ((i + oy >= 0) & (i + oy < H) & (j + ox >= 0) & (j + ox < W))
        for oy in (-1, 0, 1) for ox in (-1, 0, 1)
    ]).astype(np.float32).reshape(9, 1, HW)
    masks = jnp.asarray(masks)

    out = pl.pallas_call(
        functools.partial(_residual_block_kernel, W=W),
        out_shape=jax.ShapeDtypeStruct((N, C, HW), x.dtype),
        grid=(N,),
        in_specs=[
            pl.BlockSpec((1, C, HW), lambda n: (n, 0, 0)),      # x (per sample)
            pl.BlockSpec((C, 9 * C), lambda n: (0, 0)),         # w1 slab
            pl.BlockSpec((C, 9 * C), lambda n: (0, 0)),         # w2 slab
            pl.BlockSpec((9, 1, HW), lambda n: (0, 0, 0)),      # tap masks
        ],
        out_specs=pl.BlockSpec((1, C, HW), lambda n: (n, 0, 0)),
        scratch_shapes=[pltpu.VMEM((9 * C, HW), jnp.float32)],  # im2col buffer
        compiler_params=pltpu.CompilerParams(
            dimension_semantics=("parallel",),
        ),
    )(x_flat, w1_mat, w2_mat, masks)
    # TODO(synk): for large H*W*C (v7x: 64 MiB VMEM) switch to row-band tiling over H
    # with a 1-row halo and a two-pass (stats then normalize) InstanceNorm.
    return out.reshape(N, C, H, W)


def _reference(x, w1, b1, w2, b2):
    """Pure-JAX NCHW reference mirroring the PyTorch module."""
    def conv_norm_relu(z, w, b):
        y = jax.lax.conv_general_dilated(
            z, w, window_strides=(1, 1), padding="SAME",
            dimension_numbers=("NCHW", "HWIO", "NCHW"),
            precision=jax.lax.Precision.HIGHEST,
        ) + b[None, :, None, None]
        mean = y.mean(axis=(2, 3), keepdims=True)
        var = ((y - mean) ** 2).mean(axis=(2, 3), keepdims=True)
        return jnp.maximum((y - mean) / jnp.sqrt(var + EPS), 0.0)

    y = conv_norm_relu(x, w1, b1)
    y = conv_norm_relu(y, w2, b2)
    return jnp.maximum(x + y, 0.0)


if __name__ == "__main__":
    N, C, H, W = 2, 32, 16, 16   # in_channels == out_channels (Identity downsample)
    key = jax.random.PRNGKey(0)
    kx, k1, kb1, k2, kb2 = jax.random.split(key, 5)

    x = jax.random.normal(kx, (N, C, H, W), dtype=jnp.float32)   # PyTorch NCHW
    fan_in = 3 * 3 * C
    w1 = jax.random.normal(k1, (3, 3, C, C), dtype=jnp.float32) / np.sqrt(fan_in)
    b1 = jax.random.normal(kb1, (C,), dtype=jnp.float32) * 0.05
    w2 = jax.random.normal(k2, (3, 3, C, C), dtype=jnp.float32) / np.sqrt(fan_in)
    b2 = jax.random.normal(kb2, (C,), dtype=jnp.float32) * 0.05

    out = jax.block_until_ready(residual_block(x, w1, b1, w2, b2))
    ref = jax.block_until_ready(_reference(x, w1, b1, w2, b2))
    np.testing.assert_allclose(np.asarray(out), np.asarray(ref), rtol=5e-2, atol=5e-2)

    print("KERNEL_OK")
</pallas_src>

<mosaic_0001>
module attributes {stable_mosaic.version = 11 : i64} {
  func.func @_residual_block_kernel(%arg0: i32, %arg1: memref<1x32x256xf32, #tpu.memory_space<vmem>>, %arg2: memref<32x288xf32, #tpu.memory_space<vmem>>, %arg3: memref<32x288xf32, #tpu.memory_space<vmem>>, %arg4: memref<9x1x256xf32, #tpu.memory_space<vmem>>, %arg5: memref<1x32x256xf32, #tpu.memory_space<vmem>>, %arg6: memref<288x256xf32, #tpu.memory_space<vmem>>) attributes {dimension_semantics = [#tpu.dimension_semantics<parallel>], iteration_bounds = array<i64: 2>, scalar_prefetch = 0 : i64, scratch_operands = 1 : i64, tpu.core_type = #tpu.core_type<tc>, window_params = [{transform_indices = @transform_0, window_bounds = array<i64: 1, 32, 256>}, {pipeline_mode = #tpu.pipeline_mode<synchronous>, transform_indices = @transform_1, window_bounds = array<i64: 32, 288>}, {pipeline_mode = #tpu.pipeline_mode<synchronous>, transform_indices = @transform_2, window_bounds = array<i64: 32, 288>}, {pipeline_mode = #tpu.pipeline_mode<synchronous>, transform_indices = @transform_3, window_bounds = array<i64: 9, 1, 256>}, {transform_indices = @transform_4, window_bounds = array<i64: 1, 32, 256>}]} {
    %c0 = arith.constant 0 : index
    %c0_0 = arith.constant 0 : index
    %c0_1 = arith.constant 0 : index
    %0 = vector.load %arg1[%c0, %c0_0, %c0_1] : memref<1x32x256xf32, #tpu.memory_space<vmem>>, vector<1x32x256xf32>
    %1 = vector.shape_cast %0 : vector<1x32x256xf32> to vector<32x256xf32>
    %c17_i32 = arith.constant 17 : i32
    %2 = tpu.dynamic_rotate %1 by %c17_i32 dim 1 : vector<32x256xf32>, i32 -> vector<32x256xf32>
    %c0_2 = arith.constant 0 : index
    %c0_3 = arith.constant 0 : index
    %c0_4 = arith.constant 0 : index
    %3 = vector.load %arg4[%c0_2, %c0_3, %c0_4] : memref<9x1x256xf32, #tpu.memory_space<vmem>>, vector<1x1x256xf32>
    %4 = vector.shape_cast %3 : vector<1x1x256xf32> to vector<1x256xf32>
    %5 = vector.broadcast %4 : vector<1x256xf32> to vector<32x256xf32>
    %6 = arith.mulf %2, %5 : vector<32x256xf32>
    %c0_5 = arith.constant 0 : index
    %c0_6 = arith.constant 0 : index
    %7 = vector.load %arg6[%c0_5, %c0_6] : memref<288x256xf32, #tpu.memory_space<vmem>>, vector<32x256xf32>
    tpu.vector_store %arg6[%c0_5, %c0_6], %6 {strides = array<i32>} : memref<288x256xf32, #tpu.memory_space<vmem>>, vector<32x256xf32>,
    %c16_i32 = arith.constant 16 : i32
    %8 = tpu.dynamic_rotate %1 by %c16_i32 dim 1 : vector<32x256xf32>, i32 -> vector<32x256xf32>
    %c1 = arith.constant 1 : index
    %c0_7 = arith.constant 0 : index
    %c0_8 = arith.constant 0 : index
    %9 = vector.load %arg4[%c1, %c0_7, %c0_8] : memref<9x1x256xf32, #tpu.memory_space<vmem>>, vector<1x1x256xf32>
    %10 = vector.shape_cast %9 : vector<1x1x256xf32> to vector<1x256xf32>
    %11 = vector.broadcast %10 : vector<1x256xf32> to vector<32x256xf32>
    %12 = arith.mulf %8, %11 : vector<32x256xf32>
    %c32 = arith.constant 32 : index
    %c0_9 = arith.constant 0 : index
    %13 = vector.load %arg6[%c32, %c0_9] : memref<288x256xf32, #tpu.memory_space<vmem>>, vector<32x256xf32>
    tpu.vector_store %arg6[%c32, %c0_9], %12 {strides = array<i32>} : memref<288x256xf32, #tpu.memory_space<vmem>>, vector<32x256xf32>,
    %c15_i32 = arith.constant 15 : i32
    %14 = tpu.dynamic_rotate %1 by %c15_i32 dim 1 : vector<32x256xf32>, i32 -> vector<32x256xf32>
    %c2 = arith.constant 2 : index
    %c0_10 = arith.constant 0 : index
    %c0_11 = arith.constant 0 : index
    %15 = vector.load %arg4[%c2, %c0_10, %c0_11] : memref<9x1x256xf32, #tpu.memory_space<vmem>>, vector<1x1x256xf32>
    %16 = vector.shape_cast %15 : vector<1x1x256xf32> to vector<1x256xf32>
    %17 = vector.broadcast %16 : vector<1x256xf32> to vector<32x256xf32>
    %18 = arith.mulf %14, %17 : vector<32x256xf32>
    %c64 = arith.constant 64 : index
    %c0_12 = arith.constant 0 : index
    %19 = vector.load %arg6[%c64, %c0_12] : memref<288x256xf32, #tpu.memory_space<vmem>>, vector<32x256xf32>
    tpu.vector_store %arg6[%c64, %c0_12], %18 {strides = array<i32>} : memref<288x256xf32, #tpu.memory_space<vmem>>, vector<32x256xf32>,
    %c1_i32 = arith.constant 1 : i32
    %20 = tpu.dynamic_rotate %1 by %c1_i32 dim 1 : vector<32x256xf32>, i32 -> vector<32x256xf32>
    %c3 = arith.constant 3 : index
    %c0_13 = arith.constant 0 : index
    %c0_14 = arith.constant 0 : index
    %21 = vector.load %arg4[%c3, %c0_13, %c0_14] : memref<9x1x256xf32, #tpu.memory_space<vmem>>, vector<1x1x256xf32>
    %22 = vector.shape_cast %21 : vector<1x1x256xf32> to vector<1x256xf32>
    %23 = vector.broadcast %22 : vector<1x256xf32> to vector<32x256xf32>
    %24 = arith.mulf %20, %23 : vector<32x256xf32>
    %c96 = arith.constant 96 : index
    %c0_15 = arith.constant 0 : index
    %25 = vector.load %arg6[%c96, %c0_15] : memref<288x256xf32, #tpu.memory_space<vmem>>, vector<32x256xf32>
    tpu.vector_store %arg6[%c96, %c0_15], %24 {strides = array<i32>} : memref<288x256xf32, #tpu.memory_space<vmem>>, vector<32x256xf32>,
    %c128 = arith.constant 128 : index
    %c0_16 = arith.constant 0 : index
    %26 = vector.load %arg6[%c128, %c0_16] : memref<288x256xf32, #tpu.memory_space<vmem>>, vector<32x256xf32>
    tpu.vector_store %arg6[%c128, %c0_16], %1 {strides = array<i32>} : memref<288x256xf32, #tpu.memory_space<vmem>>, vector<32x256xf32>,
    %c255_i32 = arith.constant 255 : i32
    %27 = tpu.dynamic_rotate %1 by %c255_i32 dim 1 : vector<32x256xf32>, i32 -> vector<32x256xf32>
    %c5 = arith.constant 5 : index
    %c0_17 = arith.constant 0 : index
    %c0_18 = arith.constant 0 : index
    %28 = vector.load %arg4[%c5, %c0_17, %c0_18] : memref<9x1x256xf32, #tpu.memory_space<vmem>>, vector<1x1x256xf32>
    %29 = vector.shape_cast %28 : vector<1x1x256xf32> to vector<1x256xf32>
    %30 = vector.broadcast %29 : vector<1x256xf32> to vector<32x256xf32>
    %31 = arith.mulf %27, %30 : vector<32x256xf32>
    %c160 = arith.constant 160 : index
    %c0_19 = arith.constant 0 : index
    %32 = vector.load %arg6[%c160, %c0_19] : memref<288x256xf32, #tpu.memory_space<vmem>>, vector<32x256xf32>
    tpu.vector_store %arg6[%c160, %c0_19], %31 {strides = array<i32>} : memref<288x256xf32, #tpu.memory_space<vmem>>, vector<32x256xf32>,
    %c241_i32 = arith.constant 241 : i32
    %33 = tpu.dynamic_rotate %1 by %c241_i32 dim 1 : vector<32x256xf32>, i32 -> vector<32x256xf32>
    %c6 = arith.constant 6 : index
    %c0_20 = arith.constant 0 : index
    %c0_21 = arith.constant 0 : index
    %34 = vector.load %arg4[%c6, %c0_20, %c0_21] : memref<9x1x256xf32, #tpu.memory_space<vmem>>, vector<1x1x256xf32>
    %35 = vector.shape_cast %34 : vector<1x1x256xf32> to vector<1x256xf32>
    %36 = vector.broadcast %35 : vector<1x256xf32> to vector<32x256xf32>
    %37 = arith.mulf %33, %36 : vector<32x256xf32>
    %c192 = arith.constant 192 : index
    %c0_22 = arith.constant 0 : index
    %38 = vector.load %arg6[%c192, %c0_22] : memref<288x256xf32, #tpu.memory_space<vmem>>, vector<32x256xf32>
    tpu.vector_store %arg6[%c192, %c0_22], %37 {strides = array<i32>} : memref<288x256xf32, #tpu.memory_space<vmem>>, vector<32x256xf32>,
    %c240_i32 = arith.constant 240 : i32
    %39 = tpu.dynamic_rotate %1 by %c240_i32 dim 1 : vector<32x256xf32>, i32 -> vector<32x256xf32>
    %c7 = arith.constant 7 : index
    %c0_23 = arith.constant 0 : index
    %c0_24 = arith.constant 0 : index
    %40 = vector.load %arg4[%c7, %c0_23, %c0_24] : memref<9x1x256xf32, #tpu.memory_space<vmem>>, vector<1x1x256xf32>
    %41 = vector.shape_cast %40 : vector<1x1x256xf32> to vector<1x256xf32>
    %42 = vector.broadcast %41 : vector<1x256xf32> to vector<32x256xf32>
    %43 = arith.mulf %39, %42 : vector<32x256xf32>
    %c224 = arith.constant 224 : index
    %c0_25 = arith.constant 0 : index
    %44 = vector.load %arg6[%c224, %c0_25] : memref<288x256xf32, #tpu.memory_space<vmem>>, vector<32x256xf32>
    tpu.vector_store %arg6[%c224, %c0_25], %43 {strides = array<i32>} : memref<288x256xf32, #tpu.memory_space<vmem>>, vector<32x256xf32>,
    %c239_i32 = arith.constant 239 : i32
    %45 = tpu.dynamic_rotate %1 by %c239_i32 dim 1 : vector<32x256xf32>, i32 -> vector<32x256xf32>
    %c8 = arith.constant 8 : index
    %c0_26 = arith.constant 0 : index
    %c0_27 = arith.constant 0 : index
    %46 = vector.load %arg4[%c8, %c0_26, %c0_27] : memref<9x1x256xf32, #tpu.memory_space<vmem>>, vector<1x1x256xf32>
    %47 = vector.shape_cast %46 : vector<1x1x256xf32> to vector<1x256xf32>
    %48 = vector.broadcast %47 : vector<1x256xf32> to vector<32x256xf32>
    %49 = arith.mulf %45, %48 : vector<32x256xf32>
    %c256 = arith.constant 256 : index
    %c0_28 = arith.constant 0 : index
    %50 = vector.load %arg6[%c256, %c0_28] : memref<288x256xf32, #tpu.memory_space<vmem>>, vector<32x256xf32>
    tpu.vector_store %arg6[%c256, %c0_28], %49 {strides = array<i32>} : memref<288x256xf32, #tpu.memory_space<vmem>>, vector<32x256xf32>,
    %c0_29 = arith.constant 0 : index
    %c0_30 = arith.constant 0 : index
    %51 = vector.load %arg2[%c0_29, %c0_30] : memref<32x288xf32, #tpu.memory_space<vmem>>, vector<32x288xf32>
    %c0_31 = arith.constant 0 : index
    %c0_32 = arith.constant 0 : index
    %52 = vector.load %arg6[%c0_31, %c0_32] : memref<288x256xf32, #tpu.memory_space<vmem>>, vector<288x256xf32>
    %cst = arith.constant dense<0.000000e+00> : vector<32x256xf32>
    %53 = tpu.matmul %51, %52, %cst {dimension_numbers = #tpu.dot_dimension_numbers<[1], [0], [0], [1], [0, 0, 1, 1], [], []>} : vector<32x288xf32>, vector<288x256xf32>, vector<32x256xf32> -> vector<32x256xf32>
    %cst_33 = arith.constant dense<0.000000e+00> : vector<32xf32>
    %54 = vector.multi_reduction <add>, %53, %cst_33 [1] : vector<32x256xf32> to vector<32xf32>
    %55 = vector.shape_cast %54 : vector<32xf32> to vector<32x1xf32>
    %cst_34 = arith.constant 2.560000e+02 : f32
    %56 = vector.broadcast %cst_34 : f32 to vector<32x1xf32>
    %57 = arith.divf %55, %56 : vector<32x1xf32>
    %58 = vector.broadcast %57 : vector<32x1xf32> to vector<32x256xf32>
    %59 = arith.subf %53, %58 : vector<32x256xf32>
    %60 = arith.mulf %59, %59 : vector<32x256xf32>
    %cst_35 = arith.constant dense<0.000000e+00> : vector<32xf32>
    %61 = vector.multi_reduction <add>, %60, %cst_35 [1] : vector<32x256xf32> to vector<32xf32>
    %62 = vector.shape_cast %61 : vector<32xf32> to vector<32x1xf32>
    %cst_36 = arith.constant 2.560000e+02 : f32
    %63 = vector.broadcast %cst_36 : f32 to vector<32x1xf32>
    %64 = arith.divf %62, %63 : vector<32x1xf32>
    %cst_37 = arith.constant 9.99999974E-6 : f32
    %65 = vector.broadcast %cst_37 : f32 to vector<32x1xf32>
    %66 = arith.addf %64, %65 : vector<32x1xf32>
    %67 = math.rsqrt %66 : vector<32x1xf32>
    %68 = vector.broadcast %67 : vector<32x1xf32> to vector<32x256xf32>
    %69 = arith.mulf %59, %68 : vector<32x256xf32>
    %cst_38 = arith.constant 0.000000e+00 : f32
    %70 = vector.broadcast %cst_38 : f32 to vector<32x256xf32>
    %71 = arith.maximumf %69, %70 : vector<32x256xf32>
    %c17_i32_39 = arith.constant 17 : i32
    %72 = tpu.dynamic_rotate %71 by %c17_i32_39 dim 1 : vector<32x256xf32>, i32 -> vector<32x256xf32>
    %c0_40 = arith.constant 0 : index
    %c0_41 = arith.constant 0 : index
    %c0_42 = arith.constant 0 : index
    %73 = vector.load %arg4[%c0_40, %c0_41, %c0_42] : memref<9x1x256xf32, #tpu.memory_space<vmem>>, vector<1x1x256xf32>
    %74 = vector.shape_cast %73 : vector<1x1x256xf32> to vector<1x256xf32>
    %75 = vector.broadcast %74 : vector<1x256xf32> to vector<32x256xf32>
    %76 = arith.mulf %72, %75 : vector<32x256xf32>
    %c0_43 = arith.constant 0 : index
    %c0_44 = arith.constant 0 : index
    %77 = vector.load %arg6[%c0_43, %c0_44] : memref<288x256xf32, #tpu.memory_space<vmem>>, vector<32x256xf32>
    tpu.vector_store %arg6[%c0_43, %c0_44], %76 {strides = array<i32>} : memref<288x256xf32, #tpu.memory_space<vmem>>, vector<32x256xf32>,
    %c16_i32_45 = arith.constant 16 : i32
    %78 = tpu.dynamic_rotate %71 by %c16_i32_45 dim 1 : vector<32x256xf32>, i32 -> vector<32x256xf32>
    %c1_46 = arith.constant 1 : index
    %c0_47 = arith.constant 0 : index
    %c0_48 = arith.constant 0 : index
    %79 = vector.load %arg4[%c1_46, %c0_47, %c0_48] : memref<9x1x256xf32, #tpu.memory_space<vmem>>, vector<1x1x256xf32>
    %80 = vector.shape_cast %79 : vector<1x1x256xf32> to vector<1x256xf32>
    %81 = vector.broadcast %80 : vector<1x256xf32> to vector<32x256xf32>
    %82 = arith.mulf %78, %81 : vector<32x256xf32>
    %c32_49 = arith.constant 32 : index
    %c0_50 = arith.constant 0 : index
    %83 = vector.load %arg6[%c32_49, %c0_50] : memref<288x256xf32, #tpu.memory_space<vmem>>, vector<32x256xf32>
    tpu.vector_store %arg6[%c32_49, %c0_50], %82 {strides = array<i32>} : memref<288x256xf32, #tpu.memory_space<vmem>>, vector<32x256xf32>,
    %c15_i32_51 = arith.constant 15 : i32
    %84 = tpu.dynamic_rotate %71 by %c15_i32_51 dim 1 : vector<32x256xf32>, i32 -> vector<32x256xf32>
    %c2_52 = arith.constant 2 : index
    %c0_53 = arith.constant 0 : index
    %c0_54 = arith.constant 0 : index
    %85 = vector.load %arg4[%c2_52, %c0_53, %c0_54] : memref<9x1x256xf32, #tpu.memory_space<vmem>>, vector<1x1x256xf32>
    %86 = vector.shape_cast %85 : vector<1x1x256xf32> to vector<1x256xf32>
    %87 = vector.broadcast %86 : vector<1x256xf32> to vector<32x256xf32>
    %88 = arith.mulf %84, %87 : vector<32x256xf32>
    %c64_55 = arith.constant 64 : index
    %c0_56 = arith.constant 0 : index
    %89 = vector.load %arg6[%c64_55, %c0_56] : memref<288x256xf32, #tpu.memory_space<vmem>>, vector<32x256xf32>
    tpu.vector_store %arg6[%c64_55, %c0_56], %88 {strides = array<i32>} : memref<288x256xf32, #tpu.memory_space<vmem>>, vector<32x256xf32>,
    %c1_i32_57 = arith.constant 1 : i32
    %90 = tpu.dynamic_rotate %71 by %c1_i32_57 dim 1 : vector<32x256xf32>, i32 -> vector<32x256xf32>
    %c3_58 = arith.constant 3 : index
    %c0_59 = arith.constant 0 : index
    %c0_60 = arith.constant 0 : index
    %91 = vector.load %arg4[%c3_58, %c0_59, %c0_60] : memref<9x1x256xf32, #tpu.memory_space<vmem>>, vector<1x1x256xf32>
    %92 = vector.shape_cast %91 : vector<1x1x256xf32> to vector<1x256xf32>
    %93 = vector.broadcast %92 : vector<1x256xf32> to vector<32x256xf32>
    %94 = arith.mulf %90, %93 : vector<32x256xf32>
    %c96_61 = arith.constant 96 : index
    %c0_62 = arith.constant 0 : index
    %95 = vector.load %arg6[%c96_61, %c0_62] : memref<288x256xf32, #tpu.memory_space<vmem>>, vector<32x256xf32>
    tpu.vector_store %arg6[%c96_61, %c0_62], %94 {strides = array<i32>} : memref<288x256xf32, #tpu.memory_space<vmem>>, vector<32x256xf32>,
    %c128_63 = arith.constant 128 : index
    %c0_64 = arith.constant 0 : index
    %96 = vector.load %arg6[%c128_63, %c0_64] : memref<288x256xf32, #tpu.memory_space<vmem>>, vector<32x256xf32>
    tpu.vector_store %arg6[%c128_63, %c0_64], %71 {strides = array<i32>} : memref<288x256xf32, #tpu.memory_space<vmem>>, vector<32x256xf32>,
    %c255_i32_65 = arith.constant 255 : i32
    %97 = tpu.dynamic_rotate %71 by %c255_i32_65 dim 1 : vector<32x256xf32>, i32 -> vector<32x256xf32>
    %c5_66 = arith.constant 5 : index
    %c0_67 = arith.constant 0 : index
    %c0_68 = arith.constant 0 : index
    %98 = vector.load %arg4[%c5_66, %c0_67, %c0_68] : memref<9x1x256xf32, #tpu.memory_space<vmem>>, vector<1x1x256xf32>
    %99 = vector.shape_cast %98 : vector<1x1x256xf32> to vector<1x256xf32>
    %100 = vector.broadcast %99 : vector<1x256xf32> to vector<32x256xf32>
    %101 = arith.mulf %97, %100 : vector<32x256xf32>
    %c160_69 = arith.constant 160 : index
    %c0_70 = arith.constant 0 : index
    %102 = vector.load %arg6[%c160_69, %c0_70] : memref<288x256xf32, #tpu.memory_space<vmem>>, vector<32x256xf32>
    tpu.vector_store %arg6[%c160_69, %c0_70], %101 {strides = array<i32>} : memref<288x256xf32, #tpu.memory_space<vmem>>, vector<32x256xf32>,
    %c241_i32_71 = arith.constant 241 : i32
    %103 = tpu.dynamic_rotate %71 by %c241_i32_71 dim 1 : vector<32x256xf32>, i32 -> vector<32x256xf32>
    %c6_72 = arith.constant 6 : index
    %c0_73 = arith.constant 0 : index
    %c0_74 = arith.constant 0 : index
    %104 = vector.load %arg4[%c6_72, %c0_73, %c0_74] : memref<9x1x256xf32, #tpu.memory_space<vmem>>, vector<1x1x256xf32>
    %105 = vector.shape_cast %104 : vector<1x1x256xf32> to vector<1x256xf32>
    %106 = vector.broadcast %105 : vector<1x256xf32> to vector<32x256xf32>
    %107 = arith.mulf %103, %106 : vector<32x256xf32>
    %c192_75 = arith.constant 192 : index
    %c0_76 = arith.constant 0 : index
    %108 = vector.load %arg6[%c192_75, %c0_76] : memref<288x256xf32, #tpu.memory_space<vmem>>, vector<32x256xf32>
    tpu.vector_store %arg6[%c192_75, %c0_76], %107 {strides = array<i32>} : memref<288x256xf32, #tpu.memory_space<vmem>>, vector<32x256xf32>,
    %c240_i32_77 = arith.constant 240 : i32
    %109 = tpu.dynamic_rotate %71 by %c240_i32_77 dim 1 : vector<32x256xf32>, i32 -> vector<32x256xf32>
    %c7_78 = arith.constant 7 : index
    %c0_79 = arith.constant 0 : index
    %c0_80 = arith.constant 0 : index
    %110 = vector.load %arg4[%c7_78, %c0_79, %c0_80] : memref<9x1x256xf32, #tpu.memory_space<vmem>>, vector<1x1x256xf32>
    %111 = vector.shape_cast %110 : vector<1x1x256xf32> to vector<1x256xf32>
    %112 = vector.broadcast %111 : vector<1x256xf32> to vector<32x256xf32>
    %113 = arith.mulf %109, %112 : vector<32x256xf32>
    %c224_81 = arith.constant 224 : index
    %c0_82 = arith.constant 0 : index
    %114 = vector.load %arg6[%c224_81, %c0_82] : memref<288x256xf32, #tpu.memory_space<vmem>>, vector<32x256xf32>
    tpu.vector_store %arg6[%c224_81, %c0_82], %113 {strides = array<i32>} : memref<288x256xf32, #tpu.memory_space<vmem>>, vector<32x256xf32>,
    %c239_i32_83 = arith.constant 239 : i32
    %115 = tpu.dynamic_rotate %71 by %c239_i32_83 dim 1 : vector<32x256xf32>, i32 -> vector<32x256xf32>
    %c8_84 = arith.constant 8 : index
    %c0_85 = arith.constant 0 : index
    %c0_86 = arith.constant 0 : index
    %116 = vector.load %arg4[%c8_84, %c0_85, %c0_86] : memref<9x1x256xf32, #tpu.memory_space<vmem>>, vector<1x1x256xf32>
    %117 = vector.shape_cast %116 : vector<1x1x256xf32> to vector<1x256xf32>
    %118 = vector.broadcast %117 : vector<1x256xf32> to vector<32x256xf32>
    %119 = arith.mulf %115, %118 : vector<32x256xf32>
    %c256_87 = arith.constant 256 : index
    %c0_88 = arith.constant 0 : index
    %120 = vector.load %arg6[%c256_87, %c0_88] : memref<288x256xf32, #tpu.memory_space<vmem>>, vector<32x256xf32>
    tpu.vector_store %arg6[%c256_87, %c0_88], %119 {strides = array<i32>} : memref<288x256xf32, #tpu.memory_space<vmem>>, vector<32x256xf32>,
    %c0_89 = arith.constant 0 : index
    %c0_90 = arith.constant 0 : index
    %121 = vector.load %arg3[%c0_89, %c0_90] : memref<32x288xf32, #tpu.memory_space<vmem>>, vector<32x288xf32>
    %c0_91 = arith.constant 0 : index
    %c0_92 = arith.constant 0 : index
    %122 = vector.load %arg6[%c0_91, %c0_92] : memref<288x256xf32, #tpu.memory_space<vmem>>, vector<288x256xf32>
    %cst_93 = arith.constant dense<0.000000e+00> : vector<32x256xf32>
    %123 = tpu.matmul %121, %122, %cst_93 {dimension_numbers = #tpu.dot_dimension_numbers<[1], [0], [0], [1], [0, 0, 1, 1], [], []>} : vector<32x288xf32>, vector<288x256xf32>, vector<32x256xf32> -> vector<32x256xf32>
    %cst_94 = arith.constant dense<0.000000e+00> : vector<32xf32>
    %124 = vector.multi_reduction <add>, %123, %cst_94 [1] : vector<32x256xf32> to vector<32xf32>
    %125 = vector.shape_cast %124 : vector<32xf32> to vector<32x1xf32>
    %cst_95 = arith.constant 2.560000e+02 : f32
    %126 = vector.broadcast %cst_95 : f32 to vector<32x1xf32>
    %127 = arith.divf %125, %126 : vector<32x1xf32>
    %128 = vector.broadcast %127 : vector<32x1xf32> to vector<32x256xf32>
    %129 = arith.subf %123, %128 : vector<32x256xf32>
    %130 = arith.mulf %129, %129 : vector<32x256xf32>
    %cst_96 = arith.constant dense<0.000000e+00> : vector<32xf32>
    %131 = vector.multi_reduction <add>, %130, %cst_96 [1] : vector<32x256xf32> to vector<32xf32>
    %132 = vector.shape_cast %131 : vector<32xf32> to vector<32x1xf32>
    %cst_97 = arith.constant 2.560000e+02 : f32
    %133 = vector.broadcast %cst_97 : f32 to vector<32x1xf32>
    %134 = arith.divf %132, %133 : vector<32x1xf32>
    %cst_98 = arith.constant 9.99999974E-6 : f32
    %135 = vector.broadcast %cst_98 : f32 to vector<32x1xf32>
    %136 = arith.addf %134, %135 : vector<32x1xf32>
    %137 = math.rsqrt %136 : vector<32x1xf32>
    %138 = vector.broadcast %137 : vector<32x1xf32> to vector<32x256xf32>
    %139 = arith.mulf %129, %138 : vector<32x256xf32>
    %cst_99 = arith.constant 0.000000e+00 : f32
    %140 = vector.broadcast %cst_99 : f32 to vector<32x256xf32>
    %141 = arith.maximumf %139, %140 : vector<32x256xf32>
    %142 = arith.addf %1, %141 : vector<32x256xf32>
    %cst_100 = arith.constant 0.000000e+00 : f32
    %143 = vector.broadcast %cst_100 : f32 to vector<32x256xf32>
    %144 = arith.maximumf %142, %143 : vector<32x256xf32>
    %c0_101 = arith.constant 0 : index
    %c0_102 = arith.constant 0 : index
    %c0_103 = arith.constant 0 : index
    %145 = vector.load %arg5[%c0_101, %c0_102, %c0_103] : memref<1x32x256xf32, #tpu.memory_space<vmem>>, vector<1x32x256xf32>
    %146 = vector.shape_cast %145 : vector<1x32x256xf32> to vector<32x256xf32>
    %147 = vector.shape_cast %144 : vector<32x256xf32> to vector<1x32x256xf32>
    tpu.vector_store %arg5[%c0_101, %c0_102, %c0_103], %147 {strides = array<i32>} : memref<1x32x256xf32, #tpu.memory_space<vmem>>, vector<1x32x256xf32>,
    return
  }
  func.func @transform_0(%arg0: i32) -> (i32, i32, i32) {
    %c0_i32 = arith.constant 0 : i32
    %c0_i32_0 = arith.constant 0 : i32
    %c0_i32_1 = arith.constant 0 : i32
    return %arg0, %c0_i32, %c0_i32_0 : i32, i32, i32
  }
  func.func @transform_1(%arg0: i32) -> (i32, i32) {
    %c0_i32 = arith.constant 0 : i32
    %c0_i32_0 = arith.constant 0 : i32
    %c0_i32_1 = arith.constant 0 : i32
    return %c0_i32, %c0_i32_0 : i32, i32
  }
  func.func @transform_2(%arg0: i32) -> (i32, i32) {
    %c0_i32 = arith.constant 0 : i32
    %c0_i32_0 = arith.constant 0 : i32
    %c0_i32_1 = arith.constant 0 : i32
    return %c0_i32, %c0_i32_0 : i32, i32
  }
  func.func @transform_3(%arg0: i32) -> (i32, i32, i32) {
    %c0_i32 = arith.constant 0 : i32
    %c0_i32_0 = arith.constant 0 : i32
    %c0_i32_1 = arith.constant 0 : i32
    %c0_i32_2 = arith.constant 0 : i32
    return %c0_i32, %c0_i32_0, %c0_i32_1 : i32, i32, i32
  }
  func.func @transform_4(%arg0: i32) -> (i32, i32, i32) {
    %c0_i32 = arith.constant 0 : i32
    %c0_i32_0 = arith.constant 0 : i32
    %c0_i32_1 = arith.constant 0 : i32
    return %arg0, %c0_i32, %c0_i32_0 : i32, i32, i32
  }
}

</mosaic_0001>

<llo_original>
// kernel: residual_block.1
$region0: #{residual_block.1}
  #allocation0 [shape = 'u32[]', space=smem, size = 0x4, offset = 0x4, fixed_abs, tag = 'smem constant byte address 0x4 - core index']
  #allocation1 [shape = 'u32[72,128]{1,0:T(1,128)}', space=vmem, size = 0x9000, scoped, tag = 'internal scratch']
  #allocation2 [shape = 'f32[288,256]{1,0:T(8,128)}', space=vmem, size = 0x48000, scoped, tag = 'scratch operand']
  %s0 = inlined_call_operand.vmem [shape: f32[2,32,256], index: 0, kind: input, shape index: {}]
  %s1 = inlined_call_operand.vmem [shape: f32[32,288], index: 1, kind: input, shape index: {}]
  %s2 = inlined_call_operand.vmem [shape: f32[32,288], index: 2, kind: input, shape index: {}]
  %s3 = inlined_call_operand.vmem [shape: f32[9,1,256], index: 3, kind: input, shape index: {}]
  %s4 = inlined_call_operand.vmem [shape: f32[2,32,256], index: 4, kind: output, shape index: {}]
  %s5 = sld [smem:[#allocation0]]
  $region49: #{residual_block.1} parent=0
    _
  %s7 = ssub.s32 1, %s5
  %s8 = scalar_select 0, %s7, %s5
  loop: start=0, step=1, limit=4
  $region2: #{residual_block.1} parent=0 // loop_pre_header
    _
  $region3: #{residual_block.1} parent=0 // loop_header
    %s10 = sphi 0, %s14
    %p11 = scmp.ge.s32.totalorder %s10, 4
    %s20 = sphi 0, %s22
    %s23 = sphi 0, %s20
    %s24 = sphi 0, %s23
    %s40 = sphi 0, %s24
    %s44 = sphi 0, %s44
    %s46 = sphi 0, %s44
    %s47 = sphi 0, %s46
    %s61 = sphi 0, %s47
    %s65 = sphi 0, %s65
    %s67 = sphi 0, %s65
    %s68 = sphi 0, %s67
    %s82 = sphi 0, %s68
    %s86 = sphi 0, %s86
    %s88 = sphi 0, %s86
    %s89 = sphi 0, %s88
    %s103 = sphi 0, %s89
    %s109 = sphi 0, %s111
    %s112 = sphi 0, %s109
    %s113 = sphi 0, %s112
    %s129 = sphi 0, %s113
  $region4: #{residual_block.1} parent=0 // loop_header_branch
    %13 = sbr.rel (%p11) target = $region8
  $region5: #{residual_block.1} parent=0 // loop_body
    %s15 = ssub.s32 %s10, 1
    %s16 = ssub.s32 %s10, 2
    %s17 = sadd.s32 %s10, 1
    %s18 = ssub.s32 %s10, %s17
    %p19 = scmp.eq.s32.totalorder %s18, 0
    %s21 = sadd.s32 %s20, 1
    %s22 = scalar_select %p19, %s20, %s21
    %p25 = pneg %p19
    %p26 = scmp.eq.s32.totalorder %s10, 1
    %p27 = por %p25, %p26
    %p28 = scmp.ne.s32.totalorder %s20, %s23
    %p29 = scmp.eq.s32.totalorder %s10, 0
    %p30 = por %p28, %p29
    %p31 = scmp.ne.s32.totalorder %s20, %s23
    %p32 = scmp.eq.s32.totalorder %s15, 1
    %p33 = por %p31, %p32
    %p34 = scmp.ne.s32.totalorder %s23, %s24
    %p35 = scmp.eq.s32.totalorder %s15, 0
    %p36 = por %p34, %p35
    %p37 = scmp.ne.s32.totalorder %s23, %s24
    %p38 = scmp.eq.s32.totalorder %s16, 1
    %p39 = por %p37, %p38
    %p41 = scmp.ne.s32.totalorder %s24, %s40
    %p42 = scmp.eq.s32.totalorder %s16, 0
    %p43 = por %p41, %p42
    %s45 = sadd.s32 %s44, 1
    %p48 = scmp.eq.s32.totalorder %s10, 1
    %p49 = scmp.ne.s32.totalorder %s44, %s46
    %p50 = scmp.eq.s32.totalorder %s10, 0
    %p51 = por %p49, %p50
    %p52 = scmp.ne.s32.totalorder %s44, %s46
    %p53 = scmp.eq.s32.totalorder %s15, 1
    %p54 = por %p52, %p53
    %p55 = scmp.ne.s32.totalorder %s46, %s47
    %p56 = scmp.eq.s32.totalorder %s15, 0
    %p57 = por %p55, %p56
    %p58 = scmp.ne.s32.totalorder %s46, %s47
    %p59 = scmp.eq.s32.totalorder %s16, 1
    %p60 = por %p58, %p59
    %p62 = scmp.ne.s32.totalorder %s47, %s61
    %p63 = scmp.eq.s32.totalorder %s16, 0
    %p64 = por %p62, %p63
    %s66 = sadd.s32 %s65, 1
    %p69 = scmp.eq.s32.totalorder %s10, 1
    %p70 = scmp.ne.s32.totalorder %s65, %s67
    %p71 = scmp.eq.s32.totalorder %s10, 0
    %p72 = por %p70, %p71
    %p73 = scmp.ne.s32.totalorder %s65, %s67
    %p74 = scmp.eq.s32.totalorder %s15, 1
    %p75 = por %p73, %p74
    %p76 = scmp.ne.s32.totalorder %s67, %s68
    %p77 = scmp.eq.s32.totalorder %s15, 0
    %p78 = por %p76, %p77
    %p79 = scmp.ne.s32.totalorder %s67, %s68
    %p80 = scmp.eq.s32.totalorder %s16, 1
    %p81 = por %p79, %p80
    %p83 = scmp.ne.s32.totalorder %s68, %s82
    %p84 = scmp.eq.s32.totalorder %s16, 0
    %p85 = por %p83, %p84
    %s87 = sadd.s32 %s86, 1
    %p90 = scmp.eq.s32.totalorder %s10, 1
    %p91 = scmp.ne.s32.totalorder %s86, %s88
    %p92 = scmp.eq.s32.totalorder %s10, 0
    %p93 = por %p91, %p92
    %p94 = scmp.ne.s32.totalorder %s86, %s88
    %p95 = scmp.eq.s32.totalorder %s15, 1
    %p96 = por %p94, %p95
    %p97 = scmp.ne.s32.totalorder %s88, %s89
    %p98 = scmp.eq.s32.totalorder %s15, 0
    %p99 = por %p97, %p98
    %p100 = scmp.ne.s32.totalorder %s88, %s89
    %p101 = scmp.eq.s32.totalorder %s16, 1
    %p102 = por %p100, %p101
    %p104 = scmp.ne.s32.totalorder %s89, %s103
    %p105 = scmp.eq.s32.totalorder %s16, 0
    %p106 = por %p104, %p105
    %s107 = ssub.s32 %s10, %s17
    %p108 = scmp.eq.s32.totalorder %s107, 0
    %s110 = sadd.s32 %s109, 1
    %s111 = scalar_select %p108, %s109, %s110
    %p114 = pneg %p108
    %p115 = scmp.eq.s32.totalorder %s10, 1
    %p116 = por %p114, %p115
    %p117 = scmp.ne.s32.totalorder %s109, %s112
    %p118 = scmp.eq.s32.totalorder %s10, 0
    %p119 = por %p117, %p118
    %p120 = scmp.ne.s32.totalorder %s109, %s112
    %p121 = scmp.eq.s32.totalorder %s15, 1
    %p122 = por %p120, %p121
    %p123 = scmp.ne.s32.totalorder %s112, %s113
    %p124 = scmp.eq.s32.totalorder %s15, 0
    %p125 = por %p123, %p124
    %p126 = scmp.ne.s32.totalorder %s112, %s113
    %p127 = scmp.eq.s32.totalorder %s16, 1
    %p128 = por %p126, %p127
    %p130 = scmp.ne.s32.totalorder %s113, %s129
    %p131 = scmp.eq.s32.totalorder %s16, 0
    %p132 = por %p130, %p131
    %p133 = scmp.le.s32.totalorder 1, %s10
    %p134 = scmp.lt.s32.totalorder %s10, 3
    %p135 = pnand %p133, %p134
    %p136 = pneg %p135
    // Predicated region
    $region9: #{residual_block.1} parent=5 // pred_check
      _
    $region10: #{residual_block.1} parent=5 // pred_check_branch
      %138 = sbr.rel (%p135) target = $region12
    $region11: #{residual_block.1} parent=5 // pred_region
      %s139 = ssub.s32 %s10, 1
      // Predicated region
      $region13: #{residual_block.1} parent=11 // pred_check
        %p140 = pneg %p57
      $region14: #{residual_block.1} parent=11 // pred_check_branch
        %142 = sbr.rel (%p140) target = $region16
      $region15: #{residual_block.1} parent=11 // pred_region
        _
      $region16: #{residual_block.1} parent=11 // pred_fallthru
        _
      // Predicated region
      $region17: #{residual_block.1} parent=11 // pred_check
        %p143 = pneg %p78
      $region18: #{residual_block.1} parent=11 // pred_check_branch
        %145 = sbr.rel (%p143) target = $region20
      $region19: #{residual_block.1} parent=11 // pred_region
        _
      $region20: #{residual_block.1} parent=11 // pred_fallthru
        _
      // Predicated region
      $region21: #{residual_block.1} parent=11 // pred_check
        %p146 = pneg %p99
      $region22: #{residual_block.1} parent=11 // pred_check_branch
        %148 = sbr.rel (%p146) target = $region24
      $region23: #{residual_block.1} parent=11 // pred_region
        _
      $region24: #{residual_block.1} parent=11 // pred_fallthru
        _
    $region12: #{residual_block.1} parent=5 // pred_fallthru
      _
    %p149 = scmp.lt.s32.totalorder %s10, 2
    // Predicated region
    $region25: #{residual_block.1} parent=5 // pred_check
      %p150 = pneg %p149
    $region26: #{residual_block.1} parent=5 // pred_check_branch
      %152 = sbr.rel (%p150) target = $region28
    $region27: #{residual_block.1} parent=5 // pred_region
      // Predicated region
      $region29: #{residual_block.1} parent=27 // pred_check
        %p153 = pneg %p30
      $region30: #{residual_block.1} parent=27 // pred_check_branch
        %155 = sbr.rel (%p153) target = $region32
      $region31: #{residual_block.1} parent=27 // pred_region
        %p156 = scmp.lt.s32.totalorder %s10, 1
        %s157 = scalar_select %p156, %s10, 1
        %s158 = smul.addr %s157, 8
        %s159 = smul.addr %s158, 8
        %s160 = scalar_lea.vmem %s0, %s159
      $region32: #{residual_block.1} parent=27 // pred_fallthru
        _
    $region28: #{residual_block.1} parent=5 // pred_fallthru
      _
    %p161 = scmp.le.s32.totalorder 1, %s10
    %p162 = scmp.lt.s32.totalorder %s10, 3
    %p163 = pnand %p161, %p162
    %p164 = pneg %p163
    // Predicated region
    $region33: #{residual_block.1} parent=5 // pred_check
      _
    $region34: #{residual_block.1} parent=5 // pred_check_branch
      %166 = sbr.rel (%p163) target = $region36
    $region35: #{residual_block.1} parent=5 // pred_region
      %s167 = ssub.s32 %s10, 1
      %p168 = scmp.lt.s32.totalorder %s15, 1
      %s169 = scalar_select %p168, %s15, 1
      %s170 = smul.addr %s169, 8
      %s171 = smul.addr %s170, 8
      %s172 = scalar_lea.vmem %s0, %s171
      %p173 = pneg %p36
      %p174 = pneg %p33
      %p175 = pneg %p57
      %p176 = pneg %p54
      %p177 = pneg %p78
      %p178 = pneg %p75
      %p179 = pneg %p99
      %p180 = pneg %p96
      %p181 = pneg %p125
      %p182 = pneg %p122
      %p183 = scmp.lt.s32.totalorder %s15, 1
      %s184 = scalar_select %p183, %s15, 1
      %s185 = smul.addr %s184, 8
      %s186 = smul.addr %s185, 8
      %s187 = scalar_lea.vmem %s4, %s186
      %p188 = scmp.lt.s32.totalorder %s15, 1
      %s189 = scalar_select %p188, %s15, 1
      %s190 = smul.addr %s189, 8
      %s191 = smul.addr %s190, 8
      %s192 = scalar_lea.vmem %s0, %s191
      %p193 = scmp.lt.s32.totalorder %s15, 1
      %s194 = scalar_select %p193, %s15, 1
      %s195 = smul.addr %s194, 8
      %s196 = smul.addr %s195, 8
      %s197 = scalar_lea.vmem %s4, %s196
      %v198 = vld [vmem:[%s192] sm:$0xff]
      %v199 = vld [vmem:[%s192 + $0x8] sm:$0xff]
      %v200 = vld [vmem:[%s192 + $0x10] sm:$0xff]
      %v201 = vld [vmem:[%s192 + $0x18] sm:$0xff]
      %v202 = vld [vmem:[%s192 + $0x20] sm:$0xff]
      %v203 = vld [vmem:[%s192 + $0x28] sm:$0xff]
      %v204 = vld [vmem:[%s192 + $0x30] sm:$0xff]
      %v205 = vld [vmem:[%s192 + $0x38] sm:$0xff]
      %206 = vrot.lane.b32.xlu0 %v198, 17
      %v207 = vpop.permute.xlu0 %206
      %208 = vrot.lane.b32.xlu0 %v200, 17
      %v209 = vpop.permute.xlu0 %208
      %210 = vrot.lane.b32.xlu0 %v202, 17
      %v211 = vpop.permute.xlu0 %210
      %212 = vrot.lane.b32.xlu0 %v204, 17
      %v213 = vpop.permute.xlu0 %212
      %214 = vrot.lane.b32.xlu0 %v199, 17
      %v215 = vpop.permute.xlu0 %214
      %216 = vrot.lane.b32.xlu0 %v201, 17
      %v217 = vpop.permute.xlu0 %216
      %218 = vrot.lane.b32.xlu0 %v203, 17
      %v219 = vpop.permute.xlu0 %218
      %220 = vrot.lane.b32.xlu0 %v205, 17
      %v221 = vpop.permute.xlu0 %220
      %v222 = vlaneseq
      %v223 = vand.u32 %v222, 127
      %vm224 = vcmp.lt.s32.totalorder %v223, 17
      %v225 = vsel %vm224, %v207, %v215
      %v226 = vsel %vm224, %v209, %v217
      %v227 = vsel %vm224, %v211, %v219
      %v228 = vsel %vm224, %v213, %v221
      %v229 = vsel %vm224, %v215, %v207
      %v230 = vsel %vm224, %v217, %v209
      %v231 = vsel %vm224, %v219, %v211
      %v232 = vsel %vm224, %v221, %v213
      %v233 = vld [vmem:[%s3] sm:$0x3]
      %v235 = vperm.slane %v233, 0
      %v236 = vperm.slane %v233, 1
      %v239 = vmul.f32 %v229, %v235
      %v240 = vmul.f32 %v225, %v236
      %v241 = vmul.f32 %v230, %v235
      %v242 = vmul.f32 %v226, %v236
      %v243 = vmul.f32 %v231, %v235
      %v244 = vmul.f32 %v227, %v236
      %v245 = vmul.f32 %v232, %v235
      %v246 = vmul.f32 %v228, %v236
      %247 = vst [vmem:[#allocation2] sm:$0xff] %v239
      %248 = vst [vmem:[#allocation2 + $0x8] sm:$0xff] %v240
      %249 = vst [vmem:[#allocation2 + $0x10] sm:$0xff] %v241
      %250 = vst [vmem:[#allocation2 + $0x18] sm:$0xff] %v242
      %251 = vst [vmem:[#allocation2 + $0x20] sm:$0xff] %v243
      %252 = vst [vmem:[#allocation2 + $0x28] sm:$0xff] %v244
      %253 = vst [vmem:[#allocation2 + $0x30] sm:$0xff] %v245
      %254 = vst [vmem:[#allocation2 + $0x38] sm:$0xff] %v246
      %255 = vrot.lane.b32.xlu0 %v198, 16
      %v256 = vpop.permute.xlu0 %255
      %257 = vrot.lane.b32.xlu0 %v200, 16
      %v258 = vpop.permute.xlu0 %257
      %259 = vrot.lane.b32.xlu0 %v202, 16
      %v260 = vpop.permute.xlu0 %259
      %261 = vrot.lane.b32.xlu0 %v204, 16
      %v262 = vpop.permute.xlu0 %261
      %263 = vrot.lane.b32.xlu0 %v199, 16
      %v264 = vpop.permute.xlu0 %263
      %265 = vrot.lane.b32.xlu0 %v201, 16
      %v266 = vpop.permute.xlu0 %265
      %267 = vrot.lane.b32.xlu0 %v203, 16
      %v268 = vpop.permute.xlu0 %267
      %269 = vrot.lane.b32.xlu0 %v205, 16
      %v270 = vpop.permute.xlu0 %269
      %vm271 = vcmp.lt.s32.totalorder %v223, 16
      %v272 = vsel %vm271, %v256, %v264
      %v273 = vsel %vm271, %v258, %v266
      %v274 = vsel %vm271, %v260, %v268
      %v275 = vsel %vm271, %v262, %v270
      %v276 = vsel %vm271, %v264, %v256
      %v277 = vsel %vm271, %v266, %v258
      %v278 = vsel %vm271, %v268, %v260
      %v279 = vsel %vm271, %v270, %v262
      %s280 = scalar_lea.vmem %s3, 2
      %v281 = vld [vmem:[%s280] sm:$0x3]
      %v283 = vperm.slane %v281, 0
      %v284 = vperm.slane %v281, 1
      %v287 = vmul.f32 %v276, %v283
      %v288 = vmul.f32 %v272, %v284
      %v289 = vmul.f32 %v277, %v283
      %v290 = vmul.f32 %v273, %v284
      %v291 = vmul.f32 %v278, %v283
      %v292 = vmul.f32 %v274, %v284
      %v293 = vmul.f32 %v279, %v283
      %v294 = vmul.f32 %v275, %v284
      %295 = vst [vmem:[#allocation2 + $0x40] sm:$0xff] %v287
      %296 = vst [vmem:[#allocation2 + $0x48] sm:$0xff] %v288
      %297 = vst [vmem:[#allocation2 + $0x50] sm:$0xff] %v289
      %298 = vst [vmem:[#allocation2 + $0x58] sm:$0xff] %v290
      %299 = vst [vmem:[#allocation2 + $0x60] sm:$0xff] %v291
      %300 = vst [vmem:[#allocation2 + $0x68] sm:$0xff] %v292
      %301 = vst [vmem:[#allocation2 + $0x70] sm:$0xff] %v293
      %302 = vst [vmem:[#allocation2 + $0x78] sm:$0xff] %v294
      %303 = vrot.lane.b32.xlu0 %v198, 15
      %v304 = vpop.permute.xlu0 %303
      %305 = vrot.lane.b32.xlu0 %v200, 15
      %v306 = vpop.permute.xlu0 %305
      %307 = vrot.lane.b32.xlu0 %v202, 15
      %v308 = vpop.permute.xlu0 %307
      %309 = vrot.lane.b32.xlu0 %v204, 15
      %v310 = vpop.permute.xlu0 %309
      %311 = vrot.lane.b32.xlu0 %v199, 15
      %v312 = vpop.permute.xlu0 %311
      %313 = vrot.lane.b32.xlu0 %v201, 15
      %v314 = vpop.permute.xlu0 %313
      %315 = vrot.lane.b32.xlu0 %v203, 15
      %v316 = vpop.permute.xlu0 %315
      %317 = vrot.lane.b32.xlu0 %v205, 15
      %v318 = vpop.permute.xlu0 %317
      %vm319 = vcmp.lt.s32.totalorder %v223, 15
      %v320 = vsel %vm319, %v304, %v312
      %v321 = vsel %vm319, %v306, %v314
      %v322 = vsel %vm319, %v308, %v316
      %v323 = vsel %vm319, %v310, %v318
      %v324 = vsel %vm319, %v312, %v304
      %v325 = vsel %vm319, %v314, %v306
      %v326 = vsel %vm319, %v316, %v308
      %v327 = vsel %vm319, %v318, %v310
      %s328 = scalar_lea.vmem %s3, 4
      %v329 = vld [vmem:[%s328] sm:$0x3]
      %v331 = vperm.slane %v329, 0
      %v332 = vperm.slane %v329, 1
      %v335 = vmul.f32 %v324, %v331
      %v336 = vmul.f32 %v320, %v332
      %v337 = vmul.f32 %v325, %v331
      %v338 = vmul.f32 %v321, %v332
      %v339 = vmul.f32 %v326, %v331
      %v340 = vmul.f32 %v322, %v332
      %v341 = vmul.f32 %v327, %v331
      %v342 = vmul.f32 %v323, %v332
      %343 = vst [vmem:[#allocation2 + $0x80] sm:$0xff] %v335
      %344 = vst [vmem:[#allocation2 + $0x88] sm:$0xff] %v336
      %345 = vst [vmem:[#allocation2 + $0x90] sm:$0xff] %v337
      %346 = vst [vmem:[#allocation2 + $0x98] sm:$0xff] %v338
      %347 = vst [vmem:[#allocation2 + $0xa0] sm:$0xff] %v339
      %348 = vst [vmem:[#allocation2 + $0xa8] sm:$0xff] %v340
      %349 = vst [vmem:[#allocation2 + $0xb0] sm:$0xff] %v341
      %350 = vst [vmem:[#allocation2 + $0xb8] sm:$0xff] %v342
      %351 = vrot.lane.b32.xlu0 %v198, 1
      %v352 = vpop.permute.xlu0 %351
      %353 = vrot.lane.b32.xlu0 %v200, 1
      %v354 = vpop.permute.xlu0 %353
      %355 = vrot.lane.b32.xlu0 %v202, 1
      %v356 = vpop.permute.xlu0 %355
      %357 = vrot.lane.b32.xlu0 %v204, 1
      %v358 = vpop.permute.xlu0 %357
      %359 = vrot.lane.b32.xlu0 %v199, 1
      %v360 = vpop.permute.xlu0 %359
      %361 = vrot.lane.b32.xlu0 %v201, 1
      %v362 = vpop.permute.xlu0 %361
      %363 = vrot.lane.b32.xlu0 %v203, 1
      %v364 = vpop.permute.xlu0 %363
      %365 = vrot.lane.b32.xlu0 %v205, 1
      %v366 = vpop.permute.xlu0 %365
      %vm367 = vcmp.lt.s32.totalorder %v223, 1
      %v368 = vsel %vm367, %v352, %v360
      %v369 = vsel %vm367, %v354, %v362
      %v370 = vsel %vm367, %v356, %v364
      %v371 = vsel %vm367, %v358, %v366
      %v372 = vsel %vm367, %v360, %v352
      %v373 = vsel %vm367, %v362, %v354
      %v374 = vsel %vm367, %v364, %v356
      %v375 = vsel %vm367, %v366, %v358
      %s376 = scalar_lea.vmem %s3, 6
      %v377 = vld [vmem:[%s376] sm:$0x3]
      %v379 = vperm.slane %v377, 0
      %v380 = vperm.slane %v377, 1
      %v383 = vmul.f32 %v372, %v379
      %v384 = vmul.f32 %v368, %v380
      %v385 = vmul.f32 %v373, %v379
      %v386 = vmul.f32 %v369, %v380
      %v387 = vmul.f32 %v374, %v379
      %v388 = vmul.f32 %v370, %v380
      %v389 = vmul.f32 %v375, %v379
      %v390 = vmul.f32 %v371, %v380
      %391 = vst [vmem:[#allocation2 + $0xc0] sm:$0xff] %v383
      %392 = vst [vmem:[#allocation2 + $0xc8] sm:$0xff] %v384
      %393 = vst [vmem:[#allocation2 + $0xd0] sm:$0xff] %v385
      %394 = vst [vmem:[#allocation2 + $0xd8] sm:$0xff] %v386
      %395 = vst [vmem:[#allocation2 + $0xe0] sm:$0xff] %v387
      %396 = vst [vmem:[#allocation2 + $0xe8] sm:$0xff] %v388
      %397 = vst [vmem:[#allocation2 + $0xf0] sm:$0xff] %v389
      %398 = vst [vmem:[#allocation2 + $0xf8] sm:$0xff] %v390
      %399 = vst [vmem:[#allocation2 + $0x100] sm:$0xff] %v198
      %400 = vst [vmem:[#allocation2 + $0x108] sm:$0xff] %v199
      %401 = vst [vmem:[#allocation2 + $0x110] sm:$0xff] %v200
      %402 = vst [vmem:[#allocation2 + $0x118] sm:$0xff] %v201
      %403 = vst [vmem:[#allocation2 + $0x120] sm:$0xff] %v202
      %404 = vst [vmem:[#allocation2 + $0x128] sm:$0xff] %v203
      %405 = vst [vmem:[#allocation2 + $0x130] sm:$0xff] %v204
      %406 = vst [vmem:[#allocation2 + $0x138] sm:$0xff] %v205
      %407 = vrot.lane.b32.xlu0 %v198, 127
      %v408 = vpop.permute.xlu0 %407
      %409 = vrot.lane.b32.xlu0 %v200, 127
      %v410 = vpop.permute.xlu0 %409
      %411 = vrot.lane.b32.xlu0 %v202, 127
      %v412 = vpop.permute.xlu0 %411
      %413 = vrot.lane.b32.xlu0 %v204, 127
      %v414 = vpop.permute.xlu0 %413
      %415 = vrot.lane.b32.xlu0 %v199, 127
      %v416 = vpop.permute.xlu0 %415
      %417 = vrot.lane.b32.xlu0 %v201, 127
      %v418 = vpop.permute.xlu0 %417
      %419 = vrot.lane.b32.xlu0 %v203, 127
      %v420 = vpop.permute.xlu0 %419
      %421 = vrot.lane.b32.xlu0 %v205, 127
      %v422 = vpop.permute.xlu0 %421
      %vm423 = vcmp.lt.s32.totalorder %v223, 127
      %v424 = vsel %vm423, %v408, %v416
      %v425 = vsel %vm423, %v410, %v418
      %v426 = vsel %vm423, %v412, %v420
      %v427 = vsel %vm423, %v414, %v422
      %v428 = vsel %vm423, %v416, %v408
      %v429 = vsel %vm423, %v418, %v410
      %v430 = vsel %vm423, %v420, %v412
      %v431 = vsel %vm423, %v422, %v414
      %s432 = scalar_lea.vmem %s3, 10
      %v433 = vld [vmem:[%s432] sm:$0x3]
      %v435 = vperm.slane %v433, 0
      %v436 = vperm.slane %v433, 1
      %v439 = vmul.f32 %v424, %v435
      %v440 = vmul.f32 %v428, %v436
      %v441 = vmul.f32 %v425, %v435
      %v442 = vmul.f32 %v429, %v436
      %v443 = vmul.f32 %v426, %v435
      %v444 = vmul.f32 %v430, %v436
      %v445 = vmul.f32 %v427, %v435
      %v446 = vmul.f32 %v431, %v436
      %447 = vst [vmem:[#allocation2 + $0x140] sm:$0xff] %v439
      %448 = vst [vmem:[#allocation2 + $0x148] sm:$0xff] %v440
      %449 = vst [vmem:[#allocation2 + $0x150] sm:$0xff] %v441
      %450 = vst [vmem:[#allocation2 + $0x158] sm:$0xff] %v442
      %451 = vst [vmem:[#allocation2 + $0x160] sm:$0xff] %v443
      %452 = vst [vmem:[#allocation2 + $0x168] sm:$0xff] %v444
      %453 = vst [vmem:[#allocation2 + $0x170] sm:$0xff] %v445
      %454 = vst [vmem:[#allocation2 + $0x178] sm:$0xff] %v446
      %455 = vrot.lane.b32.xlu0 %v198, 113
      %v456 = vpop.permute.xlu0 %455
      %457 = vrot.lane.b32.xlu0 %v200, 113
      %v458 = vpop.permute.xlu0 %457
      %459 = vrot.lane.b32.xlu0 %v202, 113
      %v460 = vpop.permute.xlu0 %459
      %461 = vrot.lane.b32.xlu0 %v204, 113
      %v462 = vpop.permute.xlu0 %461
      %463 = vrot.lane.b32.xlu0 %v199, 113
      %v464 = vpop.permute.xlu0 %463
      %465 = vrot.lane.b32.xlu0 %v201, 113
      %v466 = vpop.permute.xlu0 %465
      %467 = vrot.lane.b32.xlu0 %v203, 113
      %v468 = vpop.permute.xlu0 %467
      %469 = vrot.lane.b32.xlu0 %v205, 113
      %v470 = vpop.permute.xlu0 %469
      %vm471 = vcmp.lt.s32.totalorder %v223, 113
      %v472 = vsel %vm471, %v456, %v464
      %v473 = vsel %vm471, %v458, %v466
      %v474 = vsel %vm471, %v460, %v468
      %v475 = vsel %vm471, %v462, %v470
      %v476 = vsel %vm471, %v464, %v456
      %v477 = vsel %vm471, %v466, %v458
      %v478 = vsel %vm471, %v468, %v460
      %v479 = vsel %vm471, %v470, %v462
      %s480 = scalar_lea.vmem %s3, 12
      %v481 = vld [vmem:[%s480] sm:$0x3]
      %v483 = vperm.slane %v481, 0
      %v484 = vperm.slane %v481, 1
      %v487 = vmul.f32 %v472, %v483
      %v488 = vmul.f32 %v476, %v484
      %v489 = vmul.f32 %v473, %v483
      %v490 = vmul.f32 %v477, %v484
      %v491 = vmul.f32 %v474, %v483
      %v492 = vmul.f32 %v478, %v484
      %v493 = vmul.f32 %v475, %v483
      %v494 = vmul.f32 %v479, %v484
      %495 = vst [vmem:[#allocation2 + $0x180] sm:$0xff] %v487
      %496 = vst [vmem:[#allocation2 + $0x188] sm:$0xff] %v488
      %497 = vst [vmem:[#allocation2 + $0x190] sm:$0xff] %v489
      %498 = vst [vmem:[#allocation2 + $0x198] sm:$0xff] %v490
      %499 = vst [vmem:[#allocation2 + $0x1a0] sm:$0xff] %v491
      %500 = vst [vmem:[#allocation2 + $0x1a8] sm:$0xff] %v492
      %501 = vst [vmem:[#allocation2 + $0x1b0] sm:$0xff] %v493
      %502 = vst [vmem:[#allocation2 + $0x1b8] sm:$0xff] %v494
      %503 = vrot.lane.b32.xlu0 %v198, 112
      %v504 = vpop.permute.xlu0 %503
      %505 = vrot.lane.b32.xlu0 %v200, 112
      %v506 = vpop.permute.xlu0 %505
      %507 = vrot.lane.b32.xlu0 %v202, 112
      %v508 = vpop.permute.xlu0 %507
      %509 = vrot.lane.b32.xlu0 %v204, 112
      %v510 = vpop.permute.xlu0 %509
      %511 = vrot.lane.b32.xlu0 %v199, 112
      %v512 = vpop.permute.xlu0 %511
      %513 = vrot.lane.b32.xlu0 %v201, 112
      %v514 = vpop.permute.xlu0 %513
      %515 = vrot.lane.b32.xlu0 %v203, 112
      %v516 = vpop.permute.xlu0 %515
      %517 = vrot.lane.b32.xlu0 %v205, 112
      %v518 = vpop.permute.xlu0 %517
      %vm519 = vcmp.lt.s32.totalorder %v223, 112
      %v520 = vsel %vm519, %v504, %v512
      %v521 = vsel %vm519, %v506, %v514
      %v522 = vsel %vm519, %v508, %v516
      %v523 = vsel %vm519, %v510, %v518
      %v524 = vsel %vm519, %v512, %v504
      %v525 = vsel %vm519, %v514, %v506
      %v526 = vsel %vm519, %v516, %v508
      %v527 = vsel %vm519, %v518, %v510
      %s528 = scalar_lea.vmem %s3, 14
      %v529 = vld [vmem:[%s528] sm:$0x3]
      %v531 = vperm.slane %v529, 0
      %v532 = vperm.slane %v529, 1
      %v535 = vmul.f32 %v520, %v531
      %v536 = vmul.f32 %v524, %v532
      %v537 = vmul.f32 %v521, %v531
      %v538 = vmul.f32 %v525, %v532
      %v539 = vmul.f32 %v522, %v531
      %v540 = vmul.f32 %v526, %v532
      %v541 = vmul.f32 %v523, %v531
      %v542 = vmul.f32 %v527, %v532
      %543 = vst [vmem:[#allocation2 + $0x1c0] sm:$0xff] %v535
      %544 = vst [vmem:[#allocation2 + $0x1c8] sm:$0xff] %v536
      %545 = vst [vmem:[#allocation2 + $0x1d0] sm:$0xff] %v537
      %546 = vst [vmem:[#allocation2 + $0x1d8] sm:$0xff] %v538
      %547 = vst [vmem:[#allocation2 + $0x1e0] sm:$0xff] %v539
      %548 = vst [vmem:[#allocation2 + $0x1e8] sm:$0xff] %v540
      %549 = vst [vmem:[#allocation2 + $0x1f0] sm:$0xff] %v541
      %550 = vst [vmem:[#allocation2 + $0x1f8] sm:$0xff] %v542
      %551 = vrot.lane.b32.xlu0 %v198, 111
      %v552 = vpop.permute.xlu0 %551
      %553 = vrot.lane.b32.xlu0 %v200, 111
      %v554 = vpop.permute.xlu0 %553
      %555 = vrot.lane.b32.xlu0 %v202, 111
      %v556 = vpop.permute.xlu0 %555
      %557 = vrot.lane.b32.xlu0 %v204, 111
      %v558 = vpop.permute.xlu0 %557
      %559 = vrot.lane.b32.xlu0 %v199, 111
      %v560 = vpop.permute.xlu0 %559
      %561 = vrot.lane.b32.xlu0 %v201, 111
      %v562 = vpop.permute.xlu0 %561
      %563 = vrot.lane.b32.xlu0 %v203, 111
      %v564 = vpop.permute.xlu0 %563
      %565 = vrot.lane.b32.xlu0 %v205, 111
      %v566 = vpop.permute.xlu0 %565
      %vm567 = vcmp.lt.s32.totalorder %v223, 111
      %v568 = vsel %vm567, %v552, %v560
      %v569 = vsel %vm567, %v554, %v562
      %v570 = vsel %vm567, %v556, %v564
      %v571 = vsel %vm567, %v558, %v566
      %v572 = vsel %vm567, %v560, %v552
      %v573 = vsel %vm567, %v562, %v554
      %v574 = vsel %vm567, %v564, %v556
      %v575 = vsel %vm567, %v566, %v558
      %s576 = scalar_lea.vmem %s3, 16
      %v577 = vld [vmem:[%s576] sm:$0x3]
      %v579 = vperm.slane %v577, 0
      %v580 = vperm.slane %v577, 1
      %v583 = vmul.f32 %v568, %v579
      %v584 = vmul.f32 %v572, %v580
      %v585 = vmul.f32 %v569, %v579
      %v586 = vmul.f32 %v573, %v580
      %v587 = vmul.f32 %v570, %v579
      %v588 = vmul.f32 %v574, %v580
      %v589 = vmul.f32 %v571, %v579
      %v590 = vmul.f32 %v575, %v580
      %591 = vst [vmem:[#allocation2 + $0x200] sm:$0xff] %v583
      %592 = vst [vmem:[#allocation2 + $0x208] sm:$0xff] %v584
      %593 = vst [vmem:[#allocation2 + $0x210] sm:$0xff] %v585
      %594 = vst [vmem:[#allocation2 + $0x218] sm:$0xff] %v586
      %595 = vst [vmem:[#allocation2 + $0x220] sm:$0xff] %v587
      %596 = vst [vmem:[#allocation2 + $0x228] sm:$0xff] %v588
      %597 = vst [vmem:[#allocation2 + $0x230] sm:$0xff] %v589
      %598 = vst [vmem:[#allocation2 + $0x238] sm:$0xff] %v590
      %v599 = vld [vmem:[%s1] sm:$0xff]
      %v600 = vld [vmem:[%s1 + $0x8] sm:$0xff]
      %v601 = vld [vmem:[%s1 + $0x10] sm:$0xff]
      %v602 = vld [vmem:[%s1 + $0x18] sm:$0xff]
      %v603 = vld [vmem:[%s1 + $0x20] sm:$0xff]
      %v604 = vld [vmem:[%s1 + $0x28] sm:$0xff]
      %v605 = vld [vmem:[%s1 + $0x30] sm:$0xff]
      %v606 = vld [vmem:[%s1 + $0x38] sm:$0xff]
      %v607 = vld [vmem:[%s1 + $0x40] sm:$0xff]
      %v608 = vld [vmem:[%s1 + $0x48] sm:$0xff]
      %v609 = vld [vmem:[%s1 + $0x50] sm:$0xff]
      %v610 = vld [vmem:[%s1 + $0x58] sm:$0xff]
      %v611 = vld [vmem:[#allocation2] sm:$0xff]
      %v612 = vld [vmem:[#allocation2 + $0x8] sm:$0xff]
      %v613 = vld [vmem:[#allocation2 + $0x10] sm:$0xff]
      %v614 = vld [vmem:[#allocation2 + $0x18] sm:$0xff]
      %v615 = vld [vmem:[#allocation2 + $0x20] sm:$0xff]
      %v616 = vld [vmem:[#allocation2 + $0x28] sm:$0xff]
      %v617 = vld [vmem:[#allocation2 + $0x30] sm:$0xff]
      %v618 = vld [vmem:[#allocation2 + $0x38] sm:$0xff]
      %v619 = vld [vmem:[#allocation2 + $0x40] sm:$0xff]
      %v620 = vld [vmem:[#allocation2 + $0x48] sm:$0xff]
      %v621 = vld [vmem:[#allocation2 + $0x50] sm:$0xff]
      %v622 = vld [vmem:[#allocation2 + $0x58] sm:$0xff]
      %v623 = vld [vmem:[#allocation2 + $0x60] sm:$0xff]
      %v624 = vld [vmem:[#allocation2 + $0x68] sm:$0xff]
      %v625 = vld [vmem:[#allocation2 + $0x70] sm:$0xff]
      %v626 = vld [vmem:[#allocation2 + $0x78] sm:$0xff]
      %v627 = vld [vmem:[#allocation2 + $0x80] sm:$0xff]
      %v628 = vld [vmem:[#allocation2 + $0x88] sm:$0xff]
      %v629 = vld [vmem:[#allocation2 + $0x90] sm:$0xff]
      %v630 = vld [vmem:[#allocation2 + $0x98] sm:$0xff]
      %v631 = vld [vmem:[#allocation2 + $0xa0] sm:$0xff]
      %v632 = vld [vmem:[#allocation2 + $0xa8] sm:$0xff]
      %v633 = vld [vmem:[#allocation2 + $0xb0] sm:$0xff]
      %v634 = vld [vmem:[#allocation2 + $0xb8] sm:$0xff]
      %v635 = vld [vmem:[#allocation2 + $0xc0] sm:$0xff]
      %v636 = vld [vmem:[#allocation2 + $0xc8] sm:$0xff]
      %v637 = vld [vmem:[#allocation2 + $0xd0] sm:$0xff]
      %v638 = vld [vmem:[#allocation2 + $0xd8] sm:$0xff]
      %v639 = vld [vmem:[#allocation2 + $0xe0] sm:$0xff]
      %v640 = vld [vmem:[#allocation2 + $0xe8] sm:$0xff]
      %v641 = vld [vmem:[#allocation2 + $0xf0] sm:$0xff]
      %v642 = vld [vmem:[#allocation2 + $0xf8] sm:$0xff]
      %v643 = vld [vmem:[#allocation2 + $0x100] sm:$0xff]
      %v644 = vld [vmem:[#allocation2 + $0x108] sm:$0xff]
      %v645 = vld [vmem:[#allocation2 + $0x110] sm:$0xff]
      %v646 = vld [vmem:[#allocation2 + $0x118] sm:$0xff]
      %v647 = vld [vmem:[#allocation2 + $0x120] sm:$0xff]
      %v648 = vld [vmem:[#allocation2 + $0x128] sm:$0xff]
      %v649 = vld [vmem:[#allocation2 + $0x130] sm:$0xff]
      %v650 = vld [vmem:[#allocation2 + $0x138] sm:$0xff]
      %v651 = vld [vmem:[#allocation2 + $0x140] sm:$0xff]
      %v652 = vld [vmem:[#allocation2 + $0x148] sm:$0xff]
      %v653 = vld [vmem:[#allocation2 + $0x150] sm:$0xff]
      %v654 = vld [vmem:[#allocation2 + $0x158] sm:$0xff]
      %v655 = vld [vmem:[#allocation2 + $0x160] sm:$0xff]
      %v656 = vld [vmem:[#allocation2 + $0x168] sm:$0xff]
      %v657 = vld [vmem:[#allocation2 + $0x170] sm:$0xff]
      %v658 = vld [vmem:[#allocation2 + $0x178] sm:$0xff]
      %v659 = vld [vmem:[#allocation2 + $0x180] sm:$0xff]
      %v660 = vld [vmem:[#allocation2 + $0x188] sm:$0xff]
      %v661 = vld [vmem:[#allocation2 + $0x190] sm:$0xff]
      %v662 = vld [vmem:[#allocation2 + $0x198] sm:$0xff]
      %v663 = vld [vmem:[#allocation2 + $0x1a0] sm:$0xff]
      %v664 = vld [vmem:[#allocation2 + $0x1a8] sm:$0xff]
      %v665 = vld [vmem:[#allocation2 + $0x1b0] sm:$0xff]
      %v666 = vld [vmem:[#allocation2 + $0x1b8] sm:$0xff]
      %v667 = vld [vmem:[#allocation2 + $0x1c0] sm:$0xff]
      %v668 = vld [vmem:[#allocation2 + $0x1c8] sm:$0xff]
      %v669 = vld [vmem:[#allocation2 + $0x1d0] sm:$0xff]
      %v670 = vld [vmem:[#allocation2 + $0x1d8] sm:$0xff]
      %v671 = vld [vmem:[#allocation2 + $0x1e0] sm:$0xff]
      %v672 = vld [vmem:[#allocation2 + $0x1e8] sm:$0xff]
      %v673 = vld [vmem:[#allocation2 + $0x1f0] sm:$0xff]
      %v674 = vld [vmem:[#allocation2 + $0x1f8] sm:$0xff]
      %v675 = vld [vmem:[#allocation2 + $0x200] sm:$0xff]
      %v676 = vld [vmem:[#allocation2 + $0x208] sm:$0xff]
      %v677 = vld [vmem:[#allocation2 + $0x210] sm:$0xff]
      %v678 = vld [vmem:[#allocation2 + $0x218] sm:$0xff]
      %v679 = vld [vmem:[#allocation2 + $0x220] sm:$0xff]
      %v680 = vld [vmem:[#allocation2 + $0x228] sm:$0xff]
      %v681 = vld [vmem:[#allocation2 + $0x230] sm:$0xff]
      %v682 = vld [vmem:[#allocation2 + $0x238] sm:$0xff]
      %vm683 = vcmask 261120
      %v685 = vsel %vm683, %v601, 0
      %v688 = vsel %vm683, %v604, 0
      %v691 = vsel %vm683, %v607, 0
      %v694 = vsel %vm683, %v610, 0
      %696 = vmatpush.msra.mxu0 %v641
      %697 = vmatpush.msra.mxu0 %v639
      %698 = vmatpush.msra.mxu0 %v637
      %699 = vmatpush.msra.mxu0 %v635
      %700 = vmatpush.msra.mxu0 %v633
      %701 = vmatpush.msra.mxu0 %v631
      %702 = vmatpush.msra.mxu0 %v629
      %703 = vmatpush.msra.mxu0 %v627
      %704 = vmatpush.msra.mxu0 %v625
      %705 = vmatpush.msra.mxu0 %v623
      %706 = vmatpush.msra.mxu0 %v621
      %707 = vmatpush.msra.mxu0 %v619
      %708 = vmatpush.msra.mxu0 %v617
      %709 = vmatpush.msra.mxu0 %v615
      %710 = vmatpush.msra.mxu0 %v613
      %711 = vmatpush.msra.mxu0 %v611
      %712 = vmatmul.f32.gmra.mxu0 %v599
      %v713 = vpop.f32.mrf.mxu0
      %v714 = vadd.f32 0.0, %v713
      %715 = vmatmul.f32.gmra.mxu0 %v602
      %v716 = vpop.f32.mrf.mxu0
      %v717 = vadd.f32 0.0, %v716
      %718 = vmatmul.f32.gmra.mxu0 %v605
      %v719 = vpop.f32.mrf.mxu0
      %v720 = vadd.f32 0.0, %v719
      %721 = vmatmul.f32.gmra.mxu0 %v608
      %v722 = vpop.f32.mrf.mxu0
      %v723 = vadd.f32 0.0, %v722
      %724 = vdwg.mxu0
      %725 = vmatpush.msra.mxu0 %v673
      %726 = vmatpush.msra.mxu0 %v671
      %727 = vmatpush.msra.mxu0 %v669
      %728 = vmatpush.msra.mxu0 %v667
      %729 = vmatpush.msra.mxu0 %v665
      %730 = vmatpush.msra.mxu0 %v663
      %731 = vmatpush.msra.mxu0 %v661
      %732 = vmatpush.msra.mxu0 %v659
      %733 = vmatpush.msra.mxu0 %v657
      %734 = vmatpush.msra.mxu0 %v655
      %735 = vmatpush.msra.mxu0 %v653
      %736 = vmatpush.msra.mxu0 %v651
      %737 = vmatpush.msra.mxu0 %v649
      %738 = vmatpush.msra.mxu0 %v647
      %739 = vmatpush.msra.mxu0 %v645
      %740 = vmatpush.msra.mxu0 %v643
      %741 = vmatmul.f32.gmra.mxu0 %v600
      %v742 = vpop.f32.mrf.mxu0
      %v743 = vadd.f32 %v714, %v742
      %744 = vmatmul.f32.gmra.mxu0 %v603
      %v745 = vpop.f32.mrf.mxu0
      %v746 = vadd.f32 %v717, %v745
      %747 = vmatmul.f32.gmra.mxu0 %v606
      %v748 = vpop.f32.mrf.mxu0
      %v749 = vadd.f32 %v720, %v748
      %750 = vmatmul.f32.gmra.mxu0 %v609
      %v751 = vpop.f32.mrf.mxu0
      %v752 = vadd.f32 %v723, %v751
      %753 = vdwg.mxu0
      %754 = vmatpush.msra.mxu0 0.0
      %755 = vmatpush.msra.mxu0 0.0
      %756 = vmatpush.msra.mxu0 0.0
      %757 = vmatpush.msra.mxu0 0.0
      %758 = vmatpush.msra.mxu0 0.0
      %759 = vmatpush.msra.mxu0 0.0
      %760 = vmatpush.msra.mxu0 0.0
      %761 = vmatpush.msra.mxu0 0.0
      %762 = vmatpush.msra.mxu0 0.0
      %763 = vmatpush.msra.mxu0 0.0
      %764 = vmatpush.msra.mxu0 0.0
      %765 = vmatpush.msra.mxu0 0.0
      %766 = vmatpush.msra.mxu0 %v681
      %767 = vmatpush.msra.mxu0 %v679
      %768 = vmatpush.msra.mxu0 %v677
      %769 = vmatpush.msra.mxu0 %v675
      %770 = vmatmul.f32.gmra.mxu0 %v685
      %v771 = vpop.f32.mrf.mxu0
      %v772 = vadd.f32 %v743, %v771
      %773 = vmatmul.f32.gmra.mxu0 %v688
      %v774 = vpop.f32.mrf.mxu0
      %v775 = vadd.f32 %v746, %v774
      %776 = vmatmul.f32.gmra.mxu0 %v691
      %v777 = vpop.f32.mrf.mxu0
      %v778 = vadd.f32 %v749, %v777
      %779 = vmatmul.f32.gmra.mxu0 %v694
      %v780 = vpop.f32.mrf.mxu0
      %v781 = vadd.f32 %v752, %v780
      %782 = vdwg.mxu0
      %783 = vmatpush.msra.mxu0 %v642
      %784 = vmatpush.msra.mxu0 %v640
      %785 = vmatpush.msra.mxu0 %v638
      %786 = vmatpush.msra.mxu0 %v636
      %787 = vmatpush.msra.mxu0 %v634
      %788 = vmatpush.msra.mxu0 %v632
      %789 = vmatpush.msra.mxu0 %v630
      %790 = vmatpush.msra.mxu0 %v628
      %791 = vmatpush.msra.mxu0 %v626
      %792 = vmatpush.msra.mxu0 %v624
      %793 = vmatpush.msra.mxu0 %v622
      %794 = vmatpush.msra.mxu0 %v620
      %795 = vmatpush.msra.mxu0 %v618
      %796 = vmatpush.msra.mxu0 %v616
      %797 = vmatpush.msra.mxu0 %v614
      %798 = vmatpush.msra.mxu0 %v612
      %799 = vmatmul.f32.gmra.mxu0 %v599
      %v800 = vpop.f32.mrf.mxu0
      %v801 = vadd.f32 0.0, %v800
      %802 = vmatmul.f32.gmra.mxu0 %v602
      %v803 = vpop.f32.mrf.mxu0
      %v804 = vadd.f32 0.0, %v803
      %805 = vmatmul.f32.gmra.mxu0 %v605
      %v806 = vpop.f32.mrf.mxu0
      %v807 = vadd.f32 0.0, %v806
      %808 = vmatmul.f32.gmra.mxu0 %v608
      %v809 = vpop.f32.mrf.mxu0
      %v810 = vadd.f32 0.0, %v809
      %811 = vdwg.mxu0
      %812 = vmatpush.msra.mxu0 %v674
      %813 = vmatpush.msra.mxu0 %v672
      %814 = vmatpush.msra.mxu0 %v670
      %815 = vmatpush.msra.mxu0 %v668
      %816 = vmatpush.msra.mxu0 %v666
      %817 = vmatpush.msra.mxu0 %v664
      %818 = vmatpush.msra.mxu0 %v662
      %819 = vmatpush.msra.mxu0 %v660
      %820 = vmatpush.msra.mxu0 %v658
      %821 = vmatpush.msra.mxu0 %v656
      %822 = vmatpush.msra.mxu0 %v654
      %823 = vmatpush.msra.mxu0 %v652
      %824 = vmatpush.msra.mxu0 %v650
      %825 = vmatpush.msra.mxu0 %v648
      %826 = vmatpush.msra.mxu0 %v646
      %827 = vmatpush.msra.mxu0 %v644
      %828 = vmatmul.f32.gmra.mxu0 %v600
      %v829 = vpop.f32.mrf.mxu0
      %v830 = vadd.f32 %v801, %v829
      %831 = vmatmul.f32.gmra.mxu0 %v603
      %v832 = vpop.f32.mrf.mxu0
      %v833 = vadd.f32 %v804, %v832
      %834 = vmatmul.f32.gmra.mxu0 %v606
      %v835 = vpop.f32.mrf.mxu0
      %v836 = vadd.f32 %v807, %v835
      %837 = vmatmul.f32.gmra.mxu0 %v609
      %v838 = vpop.f32.mrf.mxu0
      %v839 = vadd.f32 %v810, %v838
      %840 = vdwg.mxu0
      %841 = vmatpush.msra.mxu0 0.0
      %842 = vmatpush.msra.mxu0 0.0
      %843 = vmatpush.msra.mxu0 0.0
      %844 = vmatpush.msra.mxu0 0.0
      %845 = vmatpush.msra.mxu0 0.0
      %846 = vmatpush.msra.mxu0 0.0
      %847 = vmatpush.msra.mxu0 0.0
      %848 = vmatpush.msra.mxu0 0.0
      %849 = vmatpush.msra.mxu0 0.0
      %850 = vmatpush.msra.mxu0 0.0
      %851 = vmatpush.msra.mxu0 0.0
      %852 = vmatpush.msra.mxu0 0.0
      %853 = vmatpush.msra.mxu0 %v682
      %854 = vmatpush.msra.mxu0 %v680
      %855 = vmatpush.msra.mxu0 %v678
      %856 = vmatpush.msra.mxu0 %v676
      %857 = vmatmul.f32.gmra.mxu0 %v685
      %v858 = vpop.f32.mrf.mxu0
      %v859 = vadd.f32 %v830, %v858
      %860 = vmatmul.f32.gmra.mxu0 %v688
      %v861 = vpop.f32.mrf.mxu0
      %v862 = vadd.f32 %v833, %v861
      %863 = vmatmul.f32.gmra.mxu0 %v691
      %v864 = vpop.f32.mrf.mxu0
      %v865 = vadd.f32 %v836, %v864
      %866 = vmatmul.f32.gmra.mxu0 %v694
      %v867 = vpop.f32.mrf.mxu0
      %v868 = vadd.f32 %v839, %v867
      %869 = vdwg.mxu0
      %v870 = vadd.f32 %v772, %v859
      %871 = vadd.xlane.f32.xlu0 %v870
      %v872 = vpop.xlane.xlu0 %871
      %v873 = vadd.f32 %v775, %v862
      %874 = vadd.xlane.f32.xlu0 %v873
      %v875 = vpop.xlane.xlu0 %874
      %v876 = vadd.f32 %v778, %v865
      %877 = vadd.xlane.f32.xlu0 %v876
      %v878 = vpop.xlane.xlu0 %877
      %v879 = vadd.f32 %v781, %v868
      %880 = vadd.xlane.f32.xlu0 %v879
      %v881 = vpop.xlane.xlu0 %880
      %v882 = vrcp.pop 256.0
      %v883 = vmul.f32 256.0, %v882
      %v884 = vsub.f32 1.0, %v883
      %v885 = vmul.f32 %v882, %v884
      %v886 = vadd.f32 %v882, %v885
      %vm887 = vweird.f32 %v882
      %v888 = vsel %vm887, %v882, %v886
      %v889 = vmul.f32 %v872, %v888
      %v890 = vmul.f32 %v875, %v888
      %v891 = vmul.f32 %v878, %v888
      %v892 = vmul.f32 %v881, %v888
      %v893 = vsub.f32 %v772, %v889
      %v894 = vsub.f32 %v859, %v889
      %v895 = vsub.f32 %v775, %v890
      %v896 = vsub.f32 %v862, %v890
      %v897 = vsub.f32 %v778, %v891
      %v898 = vsub.f32 %v865, %v891
      %v899 = vsub.f32 %v781, %v892
      %v900 = vsub.f32 %v868, %v892
      %v901 = vmul.f32 %v893, %v893
      %v902 = vmul.f32 %v894, %v894
      %v903 = vmul.f32 %v895, %v895
      %v904 = vmul.f32 %v896, %v896
      %v905 = vmul.f32 %v897, %v897
      %v906 = vmul.f32 %v898, %v898
      %v907 = vmul.f32 %v899, %v899
      %v908 = vmul.f32 %v900, %v900
      %v909 = vadd.f32 %v901, %v902
      %910 = vadd.xlane.f32.xlu0 %v909
      %v911 = vpop.xlane.xlu0 %910
      %v912 = vadd.f32 %v903, %v904
      %913 = vadd.xlane.f32.xlu0 %v912
      %v914 = vpop.xlane.xlu0 %913
      %v915 = vadd.f32 %v905, %v906
      %916 = vadd.xlane.f32.xlu0 %v915
      %v917 = vpop.xlane.xlu0 %916
      %v918 = vadd.f32 %v907, %v908
      %919 = vadd.xlane.f32.xlu0 %v918
      %v920 = vpop.xlane.xlu0 %919
      %v921 = vmul.f32 %v911, %v888
      %v922 = vmul.f32 %v914, %v888
      %v923 = vmul.f32 %v917, %v888
      %v924 = vmul.f32 %v920, %v888
      %v925 = vadd.f32 %v921, 1e-05
      %v926 = vadd.f32 %v922, 1e-05
      %v927 = vadd.f32 %v923, 1e-05
      %v928 = vadd.f32 %v924, 1e-05
      %v929 = vrsqrt.pop %v925
      %v930 = vmul.f32 %v929, %v925
      %v931 = vmul.f32 %v930, %v929
      %v932 = vmul.f32 0.5, %v931
      %v933 = vsub.f32 1.5, %v932
      %v934 = vmul.f32 %v929, %v933
      %vm935 = vweird.f32 %v925
      %vm936 = vweird.f32 %v929
      %vm937 = vmor %vm935, %vm936
      %v938 = vsel %vm937, %v929, %v934
      %v939 = vrsqrt.pop %v926
      %v940 = vmul.f32 %v939, %v926
      %v941 = vmul.f32 %v940, %v939
      %v942 = vmul.f32 0.5, %v941
      %v943 = vsub.f32 1.5, %v942
      %v944 = vmul.f32 %v939, %v943
      %vm945 = vweird.f32 %v926
      %vm946 = vweird.f32 %v939
      %vm947 = vmor %vm945, %vm946
      %v948 = vsel %vm947, %v939, %v944
      %v949 = vrsqrt.pop %v927
      %v950 = vmul.f32 %v949, %v927
      %v951 = vmul.f32 %v950, %v949
      %v952 = vmul.f32 0.5, %v951
      %v953 = vsub.f32 1.5, %v952
      %v954 = vmul.f32 %v949, %v953
      %vm955 = vweird.f32 %v927
      %vm956 = vweird.f32 %v949
      %vm957 = vmor %vm955, %vm956
      %v958 = vsel %vm957, %v949, %v954
      %v959 = vrsqrt.pop %v928
      %v960 = vmul.f32 %v959, %v928
      %v961 = vmul.f32 %v960, %v959
      %v962 = vmul.f32 0.5, %v961
      %v963 = vsub.f32 1.5, %v962
      %v964 = vmul.f32 %v959, %v963
      %vm965 = vweird.f32 %v928
      %vm966 = vweird.f32 %v959
      %vm967 = vmor %vm965, %vm966
      %v968 = vsel %vm967, %v959, %v964
      %v969 = vmul.f32 %v893, %v938
      %v970 = vmul.f32 %v894, %v938
      %v971 = vmul.f32 %v895, %v948
      %v972 = vmul.f32 %v896, %v948
      %v973 = vmul.f32 %v897, %v958
      %v974 = vmul.f32 %v898, %v958
      %v975 = vmul.f32 %v899, %v968
      %v976 = vmul.f32 %v900, %v968
      %v977 = vmax.f32 %v969, 0.0
      %v978 = vmax.f32 %v970, 0.0
      %v979 = vmax.f32 %v971, 0.0
      %v980 = vmax.f32 %v972, 0.0
      %v981 = vmax.f32 %v973, 0.0
      %v982 = vmax.f32 %v974, 0.0
      %v983 = vmax.f32 %v975, 0.0
      %v984 = vmax.f32 %v976, 0.0
      %985 = vrot.lane.b32.xlu0 %v977, 17
      %v986 = vpop.permute.xlu0 %985
      %987 = vrot.lane.b32.xlu0 %v979, 17
      %v988 = vpop.permute.xlu0 %987
      %989 = vrot.lane.b32.xlu0 %v981, 17
      %v990 = vpop.permute.xlu0 %989
      %991 = vrot.lane.b32.xlu0 %v983, 17
      %v992 = vpop.permute.xlu0 %991
      %993 = vrot.lane.b32.xlu0 %v978, 17
      %v994 = vpop.permute.xlu0 %993
      %995 = vrot.lane.b32.xlu0 %v980, 17
      %v996 = vpop.permute.xlu0 %995
      %997 = vrot.lane.b32.xlu0 %v982, 17
      %v998 = vpop.permute.xlu0 %997
      %999 = vrot.lane.b32.xlu0 %v984, 17
      %v1000 = vpop.permute.xlu0 %999
      %v1001 = vsel %vm224, %v986, %v994
      %v1002 = vsel %vm224, %v988, %v996
      %v1003 = vsel %vm224, %v990, %v998
      %v1004 = vsel %vm224, %v992, %v1000
      %v1005 = vsel %vm224, %v994, %v986
      %v1006 = vsel %vm224, %v996, %v988
      %v1007 = vsel %vm224, %v998, %v990
      %v1008 = vsel %vm224, %v1000, %v992
      %v1009 = vld [vmem:[%s3] sm:$0x3]
      %v1011 = vperm.slane %v1009, 0
      %v1012 = vperm.slane %v1009, 1
      %v1015 = vmul.f32 %v1005, %v1011
      %v1016 = vmul.f32 %v1001, %v1012
      %v1017 = vmul.f32 %v1006, %v1011
      %v1018 = vmul.f32 %v1002, %v1012
      %v1019 = vmul.f32 %v1007, %v1011
      %v1020 = vmul.f32 %v1003, %v1012
      %v1021 = vmul.f32 %v1008, %v1011
      %v1022 = vmul.f32 %v1004, %v1012
      %1023 = vst [vmem:[#allocation2] sm:$0xff] %v1015
      %1024 = vst [vmem:[#allocation2 + $0x8] sm:$0xff] %v1016
      %1025 = vst [vmem:[#allocation2 + $0x10] sm:$0xff] %v1017
      %1026 = vst [vmem:[#allocation2 + $0x18] sm:$0xff] %v1018
      %1027 = vst [vmem:[#allocation2 + $0x20] sm:$0xff] %v1019
      %1028 = vst [vmem:[#allocation2 + $0x28] sm:$0xff] %v1020
      %1029 = vst [vmem:[#allocation2 + $0x30] sm:$0xff] %v1021
      %1030 = vst [vmem:[#allocation2 + $0x38] sm:$0xff] %v1022
      %1031 = vrot.lane.b32.xlu0 %v977, 16
      %v1032 = vpop.permute.xlu0 %1031
      %1033 = vrot.lane.b32.xlu0 %v979, 16
      %v1034 = vpop.permute.xlu0 %1033
      %1035 = vrot.lane.b32.xlu0 %v981, 16
      %v1036 = vpop.permute.xlu0 %1035
      %1037 = vrot.lane.b32.xlu0 %v983, 16
      %v1038 = vpop.permute.xlu0 %1037
      %1039 = vrot.lane.b32.xlu0 %v978, 16
      %v1040 = vpop.permute.xlu0 %1039
      %1041 = vrot.lane.b32.xlu0 %v980, 16
      %v1042 = vpop.permute.xlu0 %1041
      %1043 = vrot.lane.b32.xlu0 %v982, 16
      %v1044 = vpop.permute.xlu0 %1043
      %1045 = vrot.lane.b32.xlu0 %v984, 16
      %v1046 = vpop.permute.xlu0 %1045
      %v1047 = vsel %vm271, %v1032, %v1040
      %v1048 = vsel %vm271, %v1034, %v1042
      %v1049 = vsel %vm271, %v1036, %v1044
      %v1050 = vsel %vm271, %v1038, %v1046
      %v1051 = vsel %vm271, %v1040, %v1032
      %v1052 = vsel %vm271, %v1042, %v1034
      %v1053 = vsel %vm271, %v1044, %v1036
      %v1054 = vsel %vm271, %v1046, %v1038
      %v1055 = vld [vmem:[%s280] sm:$0x3]
      %v1057 = vperm.slane %v1055, 0
      %v1058 = vperm.slane %v1055, 1
      %v1061 = vmul.f32 %v1051, %v1057
      %v1062 = vmul.f32 %v1047, %v1058
      %v1063 = vmul.f32 %v1052, %v1057
      %v1064 = vmul.f32 %v1048, %v1058
      %v1065 = vmul.f32 %v1053, %v1057
      %v1066 = vmul.f32 %v1049, %v1058
      %v1067 = vmul.f32 %v1054, %v1057
      %v1068 = vmul.f32 %v1050, %v1058
      %1069 = vst [vmem:[#allocation2 + $0x40] sm:$0xff] %v1061
      %1070 = vst [vmem:[#allocation2 + $0x48] sm:$0xff] %v1062
      %1071 = vst [vmem:[#allocation2 + $0x50] sm:$0xff] %v1063
      %1072 = vst [vmem:[#allocation2 + $0x58] sm:$0xff] %v1064
      %1073 = vst [vmem:[#allocation2 + $0x60] sm:$0xff] %v1065
      %1074 = vst [vmem:[#allocation2 + $0x68] sm:$0xff] %v1066
      %1075 = vst [vmem:[#allocation2 + $0x70] sm:$0xff] %v1067
      %1076 = vst [vmem:[#allocation2 + $0x78] sm:$0xff] %v1068
      %1077 = vrot.lane.b32.xlu0 %v977, 15
      %v1078 = vpop.permute.xlu0 %1077
      %1079 = vrot.lane.b32.xlu0 %v979, 15
      %v1080 = vpop.permute.xlu0 %1079
      %1081 = vrot.lane.b32.xlu0 %v981, 15
      %v1082 = vpop.permute.xlu0 %1081
      %1083 = vrot.lane.b32.xlu0 %v983, 15
      %v1084 = vpop.permute.xlu0 %1083
      %1085 = vrot.lane.b32.xlu0 %v978, 15
      %v1086 = vpop.permute.xlu0 %1085
      %1087 = vrot.lane.b32.xlu0 %v980, 15
      %v1088 = vpop.permute.xlu0 %1087
      %1089 = vrot.lane.b32.xlu0 %v982, 15
      %v1090 = vpop.permute.xlu0 %1089
      %1091 = vrot.lane.b32.xlu0 %v984, 15
      %v1092 = vpop.permute.xlu0 %1091
      %v1093 = vsel %vm319, %v1078, %v1086
      %v1094 = vsel %vm319, %v1080, %v1088
      %v1095 = vsel %vm319, %v1082, %v1090
      %v1096 = vsel %vm319, %v1084, %v1092
      %v1097 = vsel %vm319, %v1086, %v1078
      %v1098 = vsel %vm319, %v1088, %v1080
      %v1099 = vsel %vm319, %v1090, %v1082
      %v1100 = vsel %vm319, %v1092, %v1084
      %v1101 = vld [vmem:[%s328] sm:$0x3]
      %v1103 = vperm.slane %v1101, 0
      %v1104 = vperm.slane %v1101, 1
      %v1107 = vmul.f32 %v1097, %v1103
      %v1108 = vmul.f32 %v1093, %v1104
      %v1109 = vmul.f32 %v1098, %v1103
      %v1110 = vmul.f32 %v1094, %v1104
      %v1111 = vmul.f32 %v1099, %v1103
      %v1112 = vmul.f32 %v1095, %v1104
      %v1113 = vmul.f32 %v1100, %v1103
      %v1114 = vmul.f32 %v1096, %v1104
      %1115 = vst [vmem:[#allocation2 + $0x80] sm:$0xff] %v1107
      %1116 = vst [vmem:[#allocation2 + $0x88] sm:$0xff] %v1108
      %1117 = vst [vmem:[#allocation2 + $0x90] sm:$0xff] %v1109
      %1118 = vst [vmem:[#allocation2 + $0x98] sm:$0xff] %v1110
      %1119 = vst [vmem:[#allocation2 + $0xa0] sm:$0xff] %v1111
      %1120 = vst [vmem:[#allocation2 + $0xa8] sm:$0xff] %v1112
      %1121 = vst [vmem:[#allocation2 + $0xb0] sm:$0xff] %v1113
      %1122 = vst [vmem:[#allocation2 + $0xb8] sm:$0xff] %v1114
      %1123 = vrot.lane.b32.xlu0 %v977, 1
      %v1124 = vpop.permute.xlu0 %1123
      %1125 = vrot.lane.b32.xlu0 %v979, 1
      %v1126 = vpop.permute.xlu0 %1125
      %1127 = vrot.lane.b32.xlu0 %v981, 1
      %v1128 = vpop.permute.xlu0 %1127
      %1129 = vrot.lane.b32.xlu0 %v983, 1
      %v1130 = vpop.permute.xlu0 %1129
      %1131 = vrot.lane.b32.xlu0 %v978, 1
      %v1132 = vpop.permute.xlu0 %1131
      %1133 = vrot.lane.b32.xlu0 %v980, 1
      %v1134 = vpop.permute.xlu0 %1133
      %1135 = vrot.lane.b32.xlu0 %v982, 1
      %v1136 = vpop.permute.xlu0 %1135
      %1137 = vrot.lane.b32.xlu0 %v984, 1
      %v1138 = vpop.permute.xlu0 %1137
      %v1139 = vsel %vm367, %v1124, %v1132
      %v1140 = vsel %vm367, %v1126, %v1134
      %v1141 = vsel %vm367, %v1128, %v1136
      %v1142 = vsel %vm367, %v1130, %v1138
      %v1143 = vsel %vm367, %v1132, %v1124
      %v1144 = vsel %vm367, %v1134, %v1126
      %v1145 = vsel %vm367, %v1136, %v1128
      %v1146 = vsel %vm367, %v1138, %v1130
      %v1147 = vld [vmem:[%s376] sm:$0x3]
      %v1149 = vperm.slane %v1147, 0
      %v1150 = vperm.slane %v1147, 1
      %v1153 = vmul.f32 %v1143, %v1149
      %v1154 = vmul.f32 %v1139, %v1150
      %v1155 = vmul.f32 %v1144, %v1149
      %v1156 = vmul.f32 %v1140, %v1150
      %v1157 = vmul.f32 %v1145, %v1149
      %v1158 = vmul.f32 %v1141, %v1150
      %v1159 = vmul.f32 %v1146, %v1149
      %v1160 = vmul.f32 %v1142, %v1150
      %1161 = vst [vmem:[#allocation2 + $0xc0] sm:$0xff] %v1153
      %1162 = vst [vmem:[#allocation2 + $0xc8] sm:$0xff] %v1154
      %1163 = vst [vmem:[#allocation2 + $0xd0] sm:$0xff] %v1155
      %1164 = vst [vmem:[#allocation2 + $0xd8] sm:$0xff] %v1156
      %1165 = vst [vmem:[#allocation2 + $0xe0] sm:$0xff] %v1157
      %1166 = vst [vmem:[#allocation2 + $0xe8] sm:$0xff] %v1158
      %1167 = vst [vmem:[#allocation2 + $0xf0] sm:$0xff] %v1159
      %1168 = vst [vmem:[#allocation2 + $0xf8] sm:$0xff] %v1160
      %1169 = vst [vmem:[#allocation2 + $0x100] sm:$0xff] %v977
      %1170 = vst [vmem:[#allocation2 + $0x108] sm:$0xff] %v978
      %1171 = vst [vmem:[#allocation2 + $0x110] sm:$0xff] %v979
      %1172 = vst [vmem:[#allocation2 + $0x118] sm:$0xff] %v980
      %1173 = vst [vmem:[#allocation2 + $0x120] sm:$0xff] %v981
      %1174 = vst [vmem:[#allocation2 + $0x128] sm:$0xff] %v982
      %1175 = vst [vmem:[#allocation2 + $0x130] sm:$0xff] %v983
      %1176 = vst [vmem:[#allocation2 + $0x138] sm:$0xff] %v984
      %1177 = vrot.lane.b32.xlu0 %v977, 127
      %v1178 = vpop.permute.xlu0 %1177
      %1179 = vrot.lane.b32.xlu0 %v979, 127
      %v1180 = vpop.permute.xlu0 %1179
      %1181 = vrot.lane.b32.xlu0 %v981, 127
      %v1182 = vpop.permute.xlu0 %1181
      %1183 = vrot.lane.b32.xlu0 %v983, 127
      %v1184 = vpop.permute.xlu0 %1183
      %1185 = vrot.lane.b32.xlu0 %v978, 127
      %v1186 = vpop.permute.xlu0 %1185
      %1187 = vrot.lane.b32.xlu0 %v980, 127
      %v1188 = vpop.permute.xlu0 %1187
      %1189 = vrot.lane.b32.xlu0 %v982, 127
      %v1190 = vpop.permute.xlu0 %1189
      %1191 = vrot.lane.b32.xlu0 %v984, 127
      %v1192 = vpop.permute.xlu0 %1191
      %v1193 = vsel %vm423, %v1178, %v1186
      %v1194 = vsel %vm423, %v1180, %v1188
      %v1195 = vsel %vm423, %v1182, %v1190
      %v1196 = vsel %vm423, %v1184, %v1192
      %v1197 = vsel %vm423, %v1186, %v1178
      %v1198 = vsel %vm423, %v1188, %v1180
      %v1199 = vsel %vm423, %v1190, %v1182
      %v1200 = vsel %vm423, %v1192, %v1184
      %v1201 = vld [vmem:[%s432] sm:$0x3]
      %v1203 = vperm.slane %v1201, 0
      %v1204 = vperm.slane %v1201, 1
      %v1207 = vmul.f32 %v1193, %v1203
      %v1208 = vmul.f32 %v1197, %v1204
      %v1209 = vmul.f32 %v1194, %v1203
      %v1210 = vmul.f32 %v1198, %v1204
      %v1211 = vmul.f32 %v1195, %v1203
      %v1212 = vmul.f32 %v1199, %v1204
      %v1213 = vmul.f32 %v1196, %v1203
      %v1214 = vmul.f32 %v1200, %v1204
      %1215 = vst [vmem:[#allocation2 + $0x140] sm:$0xff] %v1207
      %1216 = vst [vmem:[#allocation2 + $0x148] sm:$0xff] %v1208
      %1217 = vst [vmem:[#allocation2 + $0x150] sm:$0xff] %v1209
      %1218 = vst [vmem:[#allocation2 + $0x158] sm:$0xff] %v1210
      %1219 = vst [vmem:[#allocation2 + $0x160] sm:$0xff] %v1211
      %1220 = vst [vmem:[#allocation2 + $0x168] sm:$0xff] %v1212
      %1221 = vst [vmem:[#allocation2 + $0x170] sm:$0xff] %v1213
      %1222 = vst [vmem:[#allocation2 + $0x178] sm:$0xff] %v1214
      %1223 = vrot.lane.b32.xlu0 %v977, 113
      %v1224 = vpop.permute.xlu0 %1223
      %1225 = vrot.lane.b32.xlu0 %v979, 113
      %v1226 = vpop.permute.xlu0 %1225
      %1227 = vrot.lane.b32.xlu0 %v981, 113
      %v1228 = vpop.permute.xlu0 %1227
      %1229 = vrot.lane.b32.xlu0 %v983, 113
      %v1230 = vpop.permute.xlu0 %1229
      %1231 = vrot.lane.b32.xlu0 %v978, 113
      %v1232 = vpop.permute.xlu0 %1231
      %1233 = vrot.lane.b32.xlu0 %v980, 113
      %v1234 = vpop.permute.xlu0 %1233
      %1235 = vrot.lane.b32.xlu0 %v982, 113
      %v1236 = vpop.permute.xlu0 %1235
      %1237 = vrot.lane.b32.xlu0 %v984, 113
      %v1238 = vpop.permute.xlu0 %1237
      %v1239 = vsel %vm471, %v1224, %v1232
      %v1240 = vsel %vm471, %v1226, %v1234
      %v1241 = vsel %vm471, %v1228, %v1236
      %v1242 = vsel %vm471, %v1230, %v1238
      %v1243 = vsel %vm471, %v1232, %v1224
      %v1244 = vsel %vm471, %v1234, %v1226
      %v1245 = vsel %vm471, %v1236, %v1228
      %v1246 = vsel %vm471, %v1238, %v1230
      %v1247 = vld [vmem:[%s480] sm:$0x3]
      %v1249 = vperm.slane %v1247, 0
      %v1250 = vperm.slane %v1247, 1
      %v1253 = vmul.f32 %v1239, %v1249
      %v1254 = vmul.f32 %v1243, %v1250
      %v1255 = vmul.f32 %v1240, %v1249
      %v1256 = vmul.f32 %v1244, %v1250
      %v1257 = vmul.f32 %v1241, %v1249
      %v1258 = vmul.f32 %v1245, %v1250
      %v1259 = vmul.f32 %v1242, %v1249
      %v1260 = vmul.f32 %v1246, %v1250
      %1261 = vst [vmem:[#allocation2 + $0x180] sm:$0xff] %v1253
      %1262 = vst [vmem:[#allocation2 + $0x188] sm:$0xff] %v1254
      %1263 = vst [vmem:[#allocation2 + $0x190] sm:$0xff] %v1255
      %1264 = vst [vmem:[#allocation2 + $0x198] sm:$0xff] %v1256
      %1265 = vst [vmem:[#allocation2 + $0x1a0] sm:$0xff] %v1257
      %1266 = vst [vmem:[#allocation2 + $0x1a8] sm:$0xff] %v1258
      %1267 = vst [vmem:[#allocation2 + $0x1b0] sm:$0xff] %v1259
      %1268 = vst [vmem:[#allocation2 + $0x1b8] sm:$0xff] %v1260
      %1269 = vrot.lane.b32.xlu0 %v977, 112
      %v1270 = vpop.permute.xlu0 %1269
      %1271 = vrot.lane.b32.xlu0 %v979, 112
      %v1272 = vpop.permute.xlu0 %1271
      %1273 = vrot.lane.b32.xlu0 %v981, 112
      %v1274 = vpop.permute.xlu0 %1273
      %1275 = vrot.lane.b32.xlu0 %v983, 112
      %v1276 = vpop.permute.xlu0 %1275
      %1277 = vrot.lane.b32.xlu0 %v978, 112
      %v1278 = vpop.permute.xlu0 %1277
      %1279 = vrot.lane.b32.xlu0 %v980, 112
      %v1280 = vpop.permute.xlu0 %1279
      %1281 = vrot.lane.b32.xlu0 %v982, 112
      %v1282 = vpop.permute.xlu0 %1281
      %1283 = vrot.lane.b32.xlu0 %v984, 112
      %v1284 = vpop.permute.xlu0 %1283
      %v1285 = vsel %vm519, %v1270, %v1278
      %v1286 = vsel %vm519, %v1272, %v1280
      %v1287 = vsel %vm519, %v1274, %v1282
      %v1288 = vsel %vm519, %v1276, %v1284
      %v1289 = vsel %vm519, %v1278, %v1270
      %v1290 = vsel %vm519, %v1280, %v1272
      %v1291 = vsel %vm519, %v1282, %v1274
      %v1292 = vsel %vm519, %v1284, %v1276
      %v1293 = vld [vmem:[%s528] sm:$0x3]
      %v1295 = vperm.slane %v1293, 0
      %v1296 = vperm.slane %v1293, 1
      %v1299 = vmul.f32 %v1285, %v1295
      %v1300 = vmul.f32 %v1289, %v1296
      %v1301 = vmul.f32 %v1286, %v1295
      %v1302 = vmul.f32 %v1290, %v1296
      %v1303 = vmul.f32 %v1287, %v1295
      %v1304 = vmul.f32 %v1291, %v1296
      %v1305 = vmul.f32 %v1288, %v1295
      %v1306 = vmul.f32 %v1292, %v1296
      %1307 = vst [vmem:[#allocation2 + $0x1c0] sm:$0xff] %v1299
      %1308 = vst [vmem:[#allocation2 + $0x1c8] sm:$0xff] %v1300
      %1309 = vst [vmem:[#allocation2 + $0x1d0] sm:$0xff] %v1301
      %1310 = vst [vmem:[#allocation2 + $0x1d8] sm:$0xff] %v1302
      %1311 = vst [vmem:[#allocation2 + $0x1e0] sm:$0xff] %v1303
      %1312 = vst [vmem:[#allocation2 + $0x1e8] sm:$0xff] %v1304
      %1313 = vst [vmem:[#allocation2 + $0x1f0] sm:$0xff] %v1305
      %1314 = vst [vmem:[#allocation2 + $0x1f8] sm:$0xff] %v1306
      %1315 = vrot.lane.b32.xlu0 %v977, 111
      %v1316 = vpop.permute.xlu0 %1315
      %1317 = vrot.lane.b32.xlu0 %v979, 111
      %v1318 = vpop.permute.xlu0 %1317
      %1319 = vrot.lane.b32.xlu0 %v981, 111
      %v1320 = vpop.permute.xlu0 %1319
      %1321 = vrot.lane.b32.xlu0 %v983, 111
      %v1322 = vpop.permute.xlu0 %1321
      %1323 = vrot.lane.b32.xlu0 %v978, 111
      %v1324 = vpop.permute.xlu0 %1323
      %1325 = vrot.lane.b32.xlu0 %v980, 111
      %v1326 = vpop.permute.xlu0 %1325
      %1327 = vrot.lane.b32.xlu0 %v982, 111
      %v1328 = vpop.permute.xlu0 %1327
      %1329 = vrot.lane.b32.xlu0 %v984, 111
      %v1330 = vpop.permute.xlu0 %1329
      %v1331 = vsel %vm567, %v1316, %v1324
      %v1332 = vsel %vm567, %v1318, %v1326
      %v1333 = vsel %vm567, %v1320, %v1328
      %v1334 = vsel %vm567, %v1322, %v1330
      %v1335 = vsel %vm567, %v1324, %v1316
      %v1336 = vsel %vm567, %v1326, %v1318
      %v1337 = vsel %vm567, %v1328, %v1320
      %v1338 = vsel %vm567, %v1330, %v1322
      %v1339 = vld [vmem:[%s576] sm:$0x3]
      %v1341 = vperm.slane %v1339, 0
      %v1342 = vperm.slane %v1339, 1
      %v1345 = vmul.f32 %v1331, %v1341
      %v1346 = vmul.f32 %v1335, %v1342
      %v1347 = vmul.f32 %v1332, %v1341
      %v1348 = vmul.f32 %v1336, %v1342
      %v1349 = vmul.f32 %v1333, %v1341
      %v1350 = vmul.f32 %v1337, %v1342
      %v1351 = vmul.f32 %v1334, %v1341
      %v1352 = vmul.f32 %v1338, %v1342
      %1353 = vst [vmem:[#allocation2 + $0x200] sm:$0xff] %v1345
      %1354 = vst [vmem:[#allocation2 + $0x208] sm:$0xff] %v1346
      %1355 = vst [vmem:[#allocation2 + $0x210] sm:$0xff] %v1347
      %1356 = vst [vmem:[#allocation2 + $0x218] sm:$0xff] %v1348
      %1357 = vst [vmem:[#allocation2 + $0x220] sm:$0xff] %v1349
      %1358 = vst [vmem:[#allocation2 + $0x228] sm:$0xff] %v1350
      %1359 = vst [vmem:[#allocation2 + $0x230] sm:$0xff] %v1351
      %1360 = vst [vmem:[#allocation2 + $0x238] sm:$0xff] %v1352
      %v1361 = vld [vmem:[%s2] sm:$0xff]
      %v1362 = vld [vmem:[%s2 + $0x8] sm:$0xff]
      %v1363 = vld [vmem:[%s2 + $0x10] sm:$0xff]
      %v1364 = vld [vmem:[%s2 + $0x18] sm:$0xff]
      %v1365 = vld [vmem:[%s2 + $0x20] sm:$0xff]
      %v1366 = vld [vmem:[%s2 + $0x28] sm:$0xff]
      %v1367 = vld [vmem:[%s2 + $0x30] sm:$0xff]
      %v1368 = vld [vmem:[%s2 + $0x38] sm:$0xff]
      %v1369 = vld [vmem:[%s2 + $0x40] sm:$0xff]
      %v1370 = vld [vmem:[%s2 + $0x48] sm:$0xff]
      %v1371 = vld [vmem:[%s2 + $0x50] sm:$0xff]
      %v1372 = vld [vmem:[%s2 + $0x58] sm:$0xff]
      %v1373 = vld [vmem:[#allocation2] sm:$0xff]
      %v1374 = vld [vmem:[#allocation2 + $0x8] sm:$0xff]
      %v1375 = vld [vmem:[#allocation2 + $0x10] sm:$0xff]
      %v1376 = vld [vmem:[#allocation2 + $0x18] sm:$0xff]
      %v1377 = vld [vmem:[#allocation2 + $0x20] sm:$0xff]
      %v1378 = vld [vmem:[#allocation2 + $0x28] sm:$0xff]
      %v1379 = vld [vmem:[#allocation2 + $0x30] sm:$0xff]
      %v1380 = vld [vmem:[#allocation2 + $0x38] sm:$0xff]
      %v1381 = vld [vmem:[#allocation2 + $0x40] sm:$0xff]
      %v1382 = vld [vmem:[#allocation2 + $0x48] sm:$0xff]
      %v1383 = vld [vmem:[#allocation2 + $0x50] sm:$0xff]
      %v1384 = vld [vmem:[#allocation2 + $0x58] sm:$0xff]
      %v1385 = vld [vmem:[#allocation2 + $0x60] sm:$0xff]
      %v1386 = vld [vmem:[#allocation2 + $0x68] sm:$0xff]
      %v1387 = vld [vmem:[#allocation2 + $0x70] sm:$0xff]
      %v1388 = vld [vmem:[#allocation2 + $0x78] sm:$0xff]
      %v1389 = vld [vmem:[#allocation2 + $0x80] sm:$0xff]
      %v1390 = vld [vmem:[#allocation2 + $0x88] sm:$0xff]
      %v1391 = vld [vmem:[#allocation2 + $0x90] sm:$0xff]
      %v1392 = vld [vmem:[#allocation2 + $0x98] sm:$0xff]
      %v1393 = vld [vmem:[#allocation2 + $0xa0] sm:$0xff]
      %v1394 = vld [vmem:[#allocation2 + $0xa8] sm:$0xff]
      %v1395 = vld [vmem:[#allocation2 + $0xb0] sm:$0xff]
      %v1396 = vld [vmem:[#allocation2 + $0xb8] sm:$0xff]
      %v1397 = vld [vmem:[#allocation2 + $0xc0] sm:$0xff]
      %v1398 = vld [vmem:[#allocation2 + $0xc8] sm:$0xff]
      %v1399 = vld [vmem:[#allocation2 + $0xd0] sm:$0xff]
      %v1400 = vld [vmem:[#allocation2 + $0xd8] sm:$0xff]
      %v1401 = vld [vmem:[#allocation2 + $0xe0] sm:$0xff]
      %v1402 = vld [vmem:[#allocation2 + $0xe8] sm:$0xff]
      %v1403 = vld [vmem:[#allocation2 + $0xf0] sm:$0xff]
      %v1404 = vld [vmem:[#allocation2 + $0xf8] sm:$0xff]
      %v1405 = vld [vmem:[#allocation2 + $0x100] sm:$0xff]
      %v1406 = vld [vmem:[#allocation2 + $0x108] sm:$0xff]
      %v1407 = vld [vmem:[#allocation2 + $0x110] sm:$0xff]
      %v1408 = vld [vmem:[#allocation2 + $0x118] sm:$0xff]
      %v1409 = vld [vmem:[#allocation2 + $0x120] sm:$0xff]
      %v1410 = vld [vmem:[#allocation2 + $0x128] sm:$0xff]
      %v1411 = vld [vmem:[#allocation2 + $0x130] sm:$0xff]
      %v1412 = vld [vmem:[#allocation2 + $0x138] sm:$0xff]
      %v1413 = vld [vmem:[#allocation2 + $0x140] sm:$0xff]
      %v1414 = vld [vmem:[#allocation2 + $0x148] sm:$0xff]
      %v1415 = vld [vmem:[#allocation2 + $0x150] sm:$0xff]
      %v1416 = vld [vmem:[#allocation2 + $0x158] sm:$0xff]
      %v1417 = vld [vmem:[#allocation2 + $0x160] sm:$0xff]
      %v1418 = vld [vmem:[#allocation2 + $0x168] sm:$0xff]
      %v1419 = vld [vmem:[#allocation2 + $0x170] sm:$0xff]
      %v1420 = vld [vmem:[#allocation2 + $0x178] sm:$0xff]
      %v1421 = vld [vmem:[#allocation2 + $0x180] sm:$0xff]
      %v1422 = vld [vmem:[#allocation2 + $0x188] sm:$0xff]
      %v1423 = vld [vmem:[#allocation2 + $0x190] sm:$0xff]
      %v1424 = vld [vmem:[#allocation2 + $0x198] sm:$0xff]
      %v1425 = vld [vmem:[#allocation2 + $0x1a0] sm:$0xff]
      %v1426 = vld [vmem:[#allocation2 + $0x1a8] sm:$0xff]
      %v1427 = vld [vmem:[#allocation2 + $0x1b0] sm:$0xff]
      %v1428 = vld [vmem:[#allocation2 + $0x1b8] sm:$0xff]
      %v1429 = vld [vmem:[#allocation2 + $0x1c0] sm:$0xff]
      %v1430 = vld [vmem:[#allocation2 + $0x1c8] sm:$0xff]
      %v1431 = vld [vmem:[#allocation2 + $0x1d0] sm:$0xff]
      %v1432 = vld [vmem:[#allocation2 + $0x1d8] sm:$0xff]
      %v1433 = vld [vmem:[#allocation2 + $0x1e0] sm:$0xff]
      %v1434 = vld [vmem:[#allocation2 + $0x1e8] sm:$0xff]
      %v1435 = vld [vmem:[#allocation2 + $0x1f0] sm:$0xff]
      %v1436 = vld [vmem:[#allocation2 + $0x1f8] sm:$0xff]
      %v1437 = vld [vmem:[#allocation2 + $0x200] sm:$0xff]
      %v1438 = vld [vmem:[#allocation2 + $0x208] sm:$0xff]
      %v1439 = vld [vmem:[#allocation2 + $0x210] sm:$0xff]
      %v1440 = vld [vmem:[#allocation2 + $0x218] sm:$0xff]
      %v1441 = vld [vmem:[#allocation2 + $0x220] sm:$0xff]
      %v1442 = vld [vmem:[#allocation2 + $0x228] sm:$0xff]
      %v1443 = vld [vmem:[#allocation2 + $0x230] sm:$0xff]
      %v1444 = vld [vmem:[#allocation2 + $0x238] sm:$0xff]
      %v1446 = vsel %vm683, %v1363, 0
      %v1449 = vsel %vm683, %v1366, 0
      %v1452 = vsel %vm683, %v1369, 0
      %v1455 = vsel %vm683, %v1372, 0
      %1457 = vmatpush.msra.mxu0 %v1403
      %1458 = vmatpush.msra.mxu0 %v1401
      %1459 = vmatpush.msra.mxu0 %v1399
      %1460 = vmatpush.msra.mxu0 %v1397
      %1461 = vmatpush.msra.mxu0 %v1395
      %1462 = vmatpush.msra.mxu0 %v1393
      %1463 = vmatpush.msra.mxu0 %v1391
      %1464 = vmatpush.msra.mxu0 %v1389
      %1465 = vmatpush.msra.mxu0 %v1387
      %1466 = vmatpush.msra.mxu0 %v1385
      %1467 = vmatpush.msra.mxu0 %v1383
      %1468 = vmatpush.msra.mxu0 %v1381
      %1469 = vmatpush.msra.mxu0 %v1379
      %1470 = vmatpush.msra.mxu0 %v1377
      %1471 = vmatpush.msra.mxu0 %v1375
      %1472 = vmatpush.msra.mxu0 %v1373
      %1473 = vmatmul.f32.gmra.mxu0 %v1361
      %v1474 = vpop.f32.mrf.mxu0
      %v1475 = vadd.f32 0.0, %v1474
      %1476 = vmatmul.f32.gmra.mxu0 %v1364
      %v1477 = vpop.f32.mrf.mxu0
      %v1478 = vadd.f32 0.0, %v1477
      %1479 = vmatmul.f32.gmra.mxu0 %v1367
      %v1480 = vpop.f32.mrf.mxu0
      %v1481 = vadd.f32 0.0, %v1480
      %1482 = vmatmul.f32.gmra.mxu0 %v1370
      %v1483 = vpop.f32.mrf.mxu0
      %v1484 = vadd.f32 0.0, %v1483
      %1485 = vdwg.mxu0
      %1486 = vmatpush.msra.mxu0 %v1435
      %1487 = vmatpush.msra.mxu0 %v1433
      %1488 = vmatpush.msra.mxu0 %v1431
      %1489 = vmatpush.msra.mxu0 %v1429
      %1490 = vmatpush.msra.mxu0 %v1427
      %1491 = vmatpush.msra.mxu0 %v1425
      %1492 = vmatpush.msra.mxu0 %v1423
      %1493 = vmatpush.msra.mxu0 %v1421
      %1494 = vmatpush.msra.mxu0 %v1419
      %1495 = vmatpush.msra.mxu0 %v1417
      %1496 = vmatpush.msra.mxu0 %v1415
      %1497 = vmatpush.msra.mxu0 %v1413
      %1498 = vmatpush.msra.mxu0 %v1411
      %1499 = vmatpush.msra.mxu0 %v1409
      %1500 = vmatpush.msra.mxu0 %v1407
      %1501 = vmatpush.msra.mxu0 %v1405
      %1502 = vmatmul.f32.gmra.mxu0 %v1362
      %v1503 = vpop.f32.mrf.mxu0
      %v1504 = vadd.f32 %v1475, %v1503
      %1505 = vmatmul.f32.gmra.mxu0 %v1365
      %v1506 = vpop.f32.mrf.mxu0
      %v1507 = vadd.f32 %v1478, %v1506
      %1508 = vmatmul.f32.gmra.mxu0 %v1368
      %v1509 = vpop.f32.mrf.mxu0
      %v1510 = vadd.f32 %v1481, %v1509
      %1511 = vmatmul.f32.gmra.mxu0 %v1371
      %v1512 = vpop.f32.mrf.mxu0
      %v1513 = vadd.f32 %v1484, %v1512
      %1514 = vdwg.mxu0
      %1515 = vmatpush.msra.mxu0 0.0
      %1516 = vmatpush.msra.mxu0 0.0
      %1517 = vmatpush.msra.mxu0 0.0
      %1518 = vmatpush.msra.mxu0 0.0
      %1519 = vmatpush.msra.mxu0 0.0
      %1520 = vmatpush.msra.mxu0 0.0
      %1521 = vmatpush.msra.mxu0 0.0
      %1522 = vmatpush.msra.mxu0 0.0
      %1523 = vmatpush.msra.mxu0 0.0
      %1524 = vmatpush.msra.mxu0 0.0
      %1525 = vmatpush.msra.mxu0 0.0
      %1526 = vmatpush.msra.mxu0 0.0
      %1527 = vmatpush.msra.mxu0 %v1443
      %1528 = vmatpush.msra.mxu0 %v1441
      %1529 = vmatpush.msra.mxu0 %v1439
      %1530 = vmatpush.msra.mxu0 %v1437
      %1531 = vmatmul.f32.gmra.mxu0 %v1446
      %v1532 = vpop.f32.mrf.mxu0
      %v1533 = vadd.f32 %v1504, %v1532
      %1534 = vmatmul.f32.gmra.mxu0 %v1449
      %v1535 = vpop.f32.mrf.mxu0
      %v1536 = vadd.f32 %v1507, %v1535
      %1537 = vmatmul.f32.gmra.mxu0 %v1452
      %v1538 = vpop.f32.mrf.mxu0
      %v1539 = vadd.f32 %v1510, %v1538
      %1540 = vmatmul.f32.gmra.mxu0 %v1455
      %v1541 = vpop.f32.mrf.mxu0
      %v1542 = vadd.f32 %v1513, %v1541
      %1543 = vdwg.mxu0
      %1544 = vmatpush.msra.mxu0 %v1404
      %1545 = vmatpush.msra.mxu0 %v1402
      %1546 = vmatpush.msra.mxu0 %v1400
      %1547 = vmatpush.msra.mxu0 %v1398
      %1548 = vmatpush.msra.mxu0 %v1396
      %1549 = vmatpush.msra.mxu0 %v1394
      %1550 = vmatpush.msra.mxu0 %v1392
      %1551 = vmatpush.msra.mxu0 %v1390
      %1552 = vmatpush.msra.mxu0 %v1388
      %1553 = vmatpush.msra.mxu0 %v1386
      %1554 = vmatpush.msra.mxu0 %v1384
      %1555 = vmatpush.msra.mxu0 %v1382
      %1556 = vmatpush.msra.mxu0 %v1380
      %1557 = vmatpush.msra.mxu0 %v1378
      %1558 = vmatpush.msra.mxu0 %v1376
      %1559 = vmatpush.msra.mxu0 %v1374
      %1560 = vmatmul.f32.gmra.mxu0 %v1361
      %v1561 = vpop.f32.mrf.mxu0
      %v1562 = vadd.f32 0.0, %v1561
      %1563 = vmatmul.f32.gmra.mxu0 %v1364
      %v1564 = vpop.f32.mrf.mxu0
      %v1565 = vadd.f32 0.0, %v1564
      %1566 = vmatmul.f32.gmra.mxu0 %v1367
      %v1567 = vpop.f32.mrf.mxu0
      %v1568 = vadd.f32 0.0, %v1567
      %1569 = vmatmul.f32.gmra.mxu0 %v1370
      %v1570 = vpop.f32.mrf.mxu0
      %v1571 = vadd.f32 0.0, %v1570
      %1572 = vdwg.mxu0
      %1573 = vmatpush.msra.mxu0 %v1436
      %1574 = vmatpush.msra.mxu0 %v1434
      %1575 = vmatpush.msra.mxu0 %v1432
      %1576 = vmatpush.msra.mxu0 %v1430
      %1577 = vmatpush.msra.mxu0 %v1428
      %1578 = vmatpush.msra.mxu0 %v1426
      %1579 = vmatpush.msra.mxu0 %v1424
      %1580 = vmatpush.msra.mxu0 %v1422
      %1581 = vmatpush.msra.mxu0 %v1420
      %1582 = vmatpush.msra.mxu0 %v1418
      %1583 = vmatpush.msra.mxu0 %v1416
      %1584 = vmatpush.msra.mxu0 %v1414
      %1585 = vmatpush.msra.mxu0 %v1412
      %1586 = vmatpush.msra.mxu0 %v1410
      %1587 = vmatpush.msra.mxu0 %v1408
      %1588 = vmatpush.msra.mxu0 %v1406
      %1589 = vmatmul.f32.gmra.mxu0 %v1362
      %v1590 = vpop.f32.mrf.mxu0
      %v1591 = vadd.f32 %v1562, %v1590
      %1592 = vmatmul.f32.gmra.mxu0 %v1365
      %v1593 = vpop.f32.mrf.mxu0
      %v1594 = vadd.f32 %v1565, %v1593
      %1595 = vmatmul.f32.gmra.mxu0 %v1368
      %v1596 = vpop.f32.mrf.mxu0
      %v1597 = vadd.f32 %v1568, %v1596
      %1598 = vmatmul.f32.gmra.mxu0 %v1371
      %v1599 = vpop.f32.mrf.mxu0
      %v1600 = vadd.f32 %v1571, %v1599
      %1601 = vdwg.mxu0
      %1602 = vmatpush.msra.mxu0 0.0
      %1603 = vmatpush.msra.mxu0 0.0
      %1604 = vmatpush.msra.mxu0 0.0
      %1605 = vmatpush.msra.mxu0 0.0
      %1606 = vmatpush.msra.mxu0 0.0
      %1607 = vmatpush.msra.mxu0 0.0
      %1608 = vmatpush.msra.mxu0 0.0
      %1609 = vmatpush.msra.mxu0 0.0
      %1610 = vmatpush.msra.mxu0 0.0
      %1611 = vmatpush.msra.mxu0 0.0
      %1612 = vmatpush.msra.mxu0 0.0
      %1613 = vmatpush.msra.mxu0 0.0
      %1614 = vmatpush.msra.mxu0 %v1444
      %1615 = vmatpush.msra.mxu0 %v1442
      %1616 = vmatpush.msra.mxu0 %v1440
      %1617 = vmatpush.msra.mxu0 %v1438
      %1618 = vmatmul.f32.gmra.mxu0 %v1446
      %v1619 = vpop.f32.mrf.mxu0
      %v1620 = vadd.f32 %v1591, %v1619
      %1621 = vmatmul.f32.gmra.mxu0 %v1449
      %v1622 = vpop.f32.mrf.mxu0
      %v1623 = vadd.f32 %v1594, %v1622
      %1624 = vmatmul.f32.gmra.mxu0 %v1452
      %v1625 = vpop.f32.mrf.mxu0
      %v1626 = vadd.f32 %v1597, %v1625
      %1627 = vmatmul.f32.gmra.mxu0 %v1455
      %v1628 = vpop.f32.mrf.mxu0
      %v1629 = vadd.f32 %v1600, %v1628
      %1630 = vdwg.mxu0
      %v1631 = vadd.f32 %v1533, %v1620
      %1632 = vadd.xlane.f32.xlu0 %v1631
      %v1633 = vpop.xlane.xlu0 %1632
      %v1634 = vadd.f32 %v1536, %v1623
      %1635 = vadd.xlane.f32.xlu0 %v1634
      %v1636 = vpop.xlane.xlu0 %1635
      %v1637 = vadd.f32 %v1539, %v1626
      %1638 = vadd.xlane.f32.xlu0 %v1637
      %v1639 = vpop.xlane.xlu0 %1638
      %v1640 = vadd.f32 %v1542, %v1629
      %1641 = vadd.xlane.f32.xlu0 %v1640
      %v1642 = vpop.xlane.xlu0 %1641
      %v1643 = vmul.f32 %v1633, %v888
      %v1644 = vmul.f32 %v1636, %v888
      %v1645 = vmul.f32 %v1639, %v888
      %v1646 = vmul.f32 %v1642, %v888
      %v1647 = vsub.f32 %v1533, %v1643
      %v1648 = vsub.f32 %v1620, %v1643
      %v1649 = vsub.f32 %v1536, %v1644
      %v1650 = vsub.f32 %v1623, %v1644
      %v1651 = vsub.f32 %v1539, %v1645
      %v1652 = vsub.f32 %v1626, %v1645
      %v1653 = vsub.f32 %v1542, %v1646
      %v1654 = vsub.f32 %v1629, %v1646
      %v1655 = vmul.f32 %v1647, %v1647
      %v1656 = vmul.f32 %v1648, %v1648
      %v1657 = vmul.f32 %v1649, %v1649
      %v1658 = vmul.f32 %v1650, %v1650
      %v1659 = vmul.f32 %v1651, %v1651
      %v1660 = vmul.f32 %v1652, %v1652
      %v1661 = vmul.f32 %v1653, %v1653
      %v1662 = vmul.f32 %v1654, %v1654
      %v1663 = vadd.f32 %v1655, %v1656
      %1664 = vadd.xlane.f32.xlu0 %v1663
      %v1665 = vpop.xlane.xlu0 %1664
      %v1666 = vadd.f32 %v1657, %v1658
      %1667 = vadd.xlane.f32.xlu0 %v1666
      %v1668 = vpop.xlane.xlu0 %1667
      %v1669 = vadd.f32 %v1659, %v1660
      %1670 = vadd.xlane.f32.xlu0 %v1669
      %v1671 = vpop.xlane.xlu0 %1670
      %v1672 = vadd.f32 %v1661, %v1662
      %1673 = vadd.xlane.f32.xlu0 %v1672
      %v1674 = vpop.xlane.xlu0 %1673
      %v1675 = vmul.f32 %v1665, %v888
      %v1676 = vmul.f32 %v1668, %v888
      %v1677 = vmul.f32 %v1671, %v888
      %v1678 = vmul.f32 %v1674, %v888
      %v1679 = vadd.f32 %v1675, 1e-05
      %v1680 = vadd.f32 %v1676, 1e-05
      %v1681 = vadd.f32 %v1677, 1e-05
      %v1682 = vadd.f32 %v1678, 1e-05
      %v1683 = vrsqrt.pop %v1679
      %v1684 = vmul.f32 %v1683, %v1679
      %v1685 = vmul.f32 %v1684, %v1683
      %v1686 = vmul.f32 0.5, %v1685
      %v1687 = vsub.f32 1.5, %v1686
      %v1688 = vmul.f32 %v1683, %v1687
      %vm1689 = vweird.f32 %v1679
      %vm1690 = vweird.f32 %v1683
      %vm1691 = vmor %vm1689, %vm1690
      %v1692 = vsel %vm1691, %v1683, %v1688
      %v1693 = vrsqrt.pop %v1680
      %v1694 = vmul.f32 %v1693, %v1680
      %v1695 = vmul.f32 %v1694, %v1693
      %v1696 = vmul.f32 0.5, %v1695
      %v1697 = vsub.f32 1.5, %v1696
      %v1698 = vmul.f32 %v1693, %v1697
      %vm1699 = vweird.f32 %v1680
      %vm1700 = vweird.f32 %v1693
      %vm1701 = vmor %vm1699, %vm1700
      %v1702 = vsel %vm1701, %v1693, %v1698
      %v1703 = vrsqrt.pop %v1681
      %v1704 = vmul.f32 %v1703, %v1681
      %v1705 = vmul.f32 %v1704, %v1703
      %v1706 = vmul.f32 0.5, %v1705
      %v1707 = vsub.f32 1.5, %v1706
      %v1708 = vmul.f32 %v1703, %v1707
      %vm1709 = vweird.f32 %v1681
      %vm1710 = vweird.f32 %v1703
      %vm1711 = vmor %vm1709, %vm1710
      %v1712 = vsel %vm1711, %v1703, %v1708
      %v1713 = vrsqrt.pop %v1682
      %v1714 = vmul.f32 %v1713, %v1682
      %v1715 = vmul.f32 %v1714, %v1713
      %v1716 = vmul.f32 0.5, %v1715
      %v1717 = vsub.f32 1.5, %v1716
      %v1718 = vmul.f32 %v1713, %v1717
      %vm1719 = vweird.f32 %v1682
      %vm1720 = vweird.f32 %v1713
      %vm1721 = vmor %vm1719, %vm1720
      %v1722 = vsel %vm1721, %v1713, %v1718
      %v1723 = vmul.f32 %v1647, %v1692
      %v1724 = vmul.f32 %v1648, %v1692
      %v1725 = vmul.f32 %v1649, %v1702
      %v1726 = vmul.f32 %v1650, %v1702
      %v1727 = vmul.f32 %v1651, %v1712
      %v1728 = vmul.f32 %v1652, %v1712
      %v1729 = vmul.f32 %v1653, %v1722
      %v1730 = vmul.f32 %v1654, %v1722
      %v1731 = vmax.f32 %v1723, 0.0
      %v1732 = vmax.f32 %v1724, 0.0
      %v1733 = vmax.f32 %v1725, 0.0
      %v1734 = vmax.f32 %v1726, 0.0
      %v1735 = vmax.f32 %v1727, 0.0
      %v1736 = vmax.f32 %v1728, 0.0
      %v1737 = vmax.f32 %v1729, 0.0
      %v1738 = vmax.f32 %v1730, 0.0
      %v1739 = vadd.f32 %v198, %v1731
      %v1740 = vadd.f32 %v199, %v1732
      %v1741 = vadd.f32 %v200, %v1733
      %v1742 = vadd.f32 %v201, %v1734
      %v1743 = vadd.f32 %v202, %v1735
      %v1744 = vadd.f32 %v203, %v1736
      %v1745 = vadd.f32 %v204, %v1737
      %v1746 = vadd.f32 %v205, %v1738
      %v1747 = vmax.f32 %v1739, 0.0
      %v1748 = vmax.f32 %v1740, 0.0
      %v1749 = vmax.f32 %v1741, 0.0
      %v1750 = vmax.f32 %v1742, 0.0
      %v1751 = vmax.f32 %v1743, 0.0
      %v1752 = vmax.f32 %v1744, 0.0
      %v1753 = vmax.f32 %v1745, 0.0
      %v1754 = vmax.f32 %v1746, 0.0
      %1755 = vst [vmem:[%s197] sm:$0xff] %v1747
      %1756 = vst [vmem:[%s197 + $0x8] sm:$0xff] %v1748
      %1757 = vst [vmem:[%s197 + $0x10] sm:$0xff] %v1749
      %1758 = vst [vmem:[%s197 + $0x18] sm:$0xff] %v1750
      %1759 = vst [vmem:[%s197 + $0x20] sm:$0xff] %v1751
      %1760 = vst [vmem:[%s197 + $0x28] sm:$0xff] %v1752
      %1761 = vst [vmem:[%s197 + $0x30] sm:$0xff] %v1753
      %1762 = vst [vmem:[%s197 + $0x38] sm:$0xff] %v1754
      %p1763 = scmp.lt.s32.totalorder %s15, 1
      %s1764 = scalar_select %p1763, %s15, 1
      %s1765 = smul.addr %s1764, 8
      %s1766 = smul.addr %s1765, 8
      %s1767 = scalar_lea.vmem %s4, %s1766
      // Predicated region
      $region37: #{residual_block.1} parent=35 // pred_check
        %p1768 = pneg %p122
      $region38: #{residual_block.1} parent=35 // pred_check_branch
        %1770 = sbr.rel (%p1768) target = $region40
      $region39: #{residual_block.1} parent=35 // pred_region
        _
      $region40: #{residual_block.1} parent=35 // pred_fallthru
        _
    $region36: #{residual_block.1} parent=5 // pred_fallthru
      _
    %p1771 = scmp.le.s32.totalorder 2, %s10
    // Predicated region
    $region41: #{residual_block.1} parent=5 // pred_check
      %p1772 = pneg %p1771
    $region42: #{residual_block.1} parent=5 // pred_check_branch
      %1774 = sbr.rel (%p1772) target = $region44
    $region43: #{residual_block.1} parent=5 // pred_region
      %s1775 = ssub.s32 %s10, 2
      // Predicated region
      $region45: #{residual_block.1} parent=43 // pred_check
        %p1776 = pneg %p128
      $region46: #{residual_block.1} parent=43 // pred_check_branch
        %1778 = sbr.rel (%p1776) target = $region48
      $region47: #{residual_block.1} parent=43 // pred_region
        %p1779 = scmp.lt.s32.totalorder %s16, 1
        %s1780 = scalar_select %p1779, %s16, 1
        %s1781 = smul.addr %s1780, 8
        %s1782 = smul.addr %s1781, 8
        %s1783 = scalar_lea.vmem %s4, %s1782
      $region48: #{residual_block.1} parent=43 // pred_fallthru
        _
    $region44: #{residual_block.1} parent=5 // pred_fallthru
      _
  $region6: #{residual_block.1} parent=0 // loop_footer
    %s14 = sadd.s32 1, %s10
  $region7: #{residual_block.1} parent=0 // loop_footer_branch
    %9 = sbr.rel target = $region3
  $region8: #{residual_block.1} parent=0 // loop_exit
    _

</llo_original>
